<compile_context>
chip_gen: v5e
topology: v5e:2x2
jax: 0.10.0
libtpu: 0.0.40
codegen_flags: <defaults>
</compile_context>

<pallas_src>
import jax
import jax.numpy as jnp
from jax import lax
from jax.experimental import pallas as pl
from jax.experimental.pallas import tpu as pltpu

HIDDEN_SIZE = 64
HP = 128                 # hidden padded to one full vreg lane width
INPUT_SIZE = 3
OUTPUT_SIZE = 3
SEQ_LEN = 8


def _lstm_fc_kernel(x_ref, wih_ref, whh_ref, b_ref, wfc_ref, bfc_ref, out_ref):
    T = x_ref.shape[0]
    Hp = whh_ref.shape[0]

    whh = whh_ref[...]                                  # (HP, 4*HP), loop-invariant

    # Hoisted input projection + bias: one (T, I) @ (I, 4*HP) matmul for all steps.
    gx = (jnp.dot(x_ref[...], wih_ref[...], preferred_element_type=jnp.float32)
          + b_ref[...])                                 # (T, 4*HP)

    h = jnp.zeros((1, Hp), jnp.float32)
    c = jnp.zeros((1, Hp), jnp.float32)

    # Fully unrolled recurrence (T is small and static).
    for t in range(T):
        gates = gx[t:t + 1, :] + jnp.dot(h, whh,
                                         preferred_element_type=jnp.float32)  # (1, 4*HP)
        # Gate order is [i, f, o, g]: sigmoid over one contiguous aligned range,
        # tanh over the last aligned 128-lane block.
        sig = jax.nn.sigmoid(gates[:, :3 * Hp])         # (1, 3*HP)
        g_g = jnp.tanh(gates[:, 3 * Hp:])               # (1, HP)
        i_g = sig[:, 0 * Hp:1 * Hp]
        f_g = sig[:, 1 * Hp:2 * Hp]
        o_g = sig[:, 2 * Hp:3 * Hp]
        c = f_g * c + i_g * g_g
        h = o_g * jnp.tanh(c)

    # Final FC on the last hidden state (== predictions[-1] in the reference).
    out_ref[...] = (jnp.dot(h, wfc_ref[...], preferred_element_type=jnp.float32)
                    + bfc_ref[...])


def lstm_model_forward(input_seq, kernel_params):
    """input_seq: (T, INPUT_SIZE) f32 -> (OUTPUT_SIZE,) f32."""
    w_ih, w_hh, b, w_fc, b_fc = kernel_params
    T = input_seq.shape[0]
    x = input_seq.reshape(T, INPUT_SIZE).astype(jnp.float32)

    flops = (2 * T * INPUT_SIZE * 4 * HP          # hoisted input projection
             + T * 2 * HP * 4 * HP                # recurrent matmuls
             + 2 * HP * OUTPUT_SIZE)              # final FC
    transcendentals = T * (4 * HP + HP)           # gate activations + tanh(c)
    bytes_accessed = 4 * (T * INPUT_SIZE + INPUT_SIZE * 4 * HP + HP * 4 * HP
                          + 4 * HP + HP * OUTPUT_SIZE + OUTPUT_SIZE + OUTPUT_SIZE)

    vmem = pl.BlockSpec(memory_space=pltpu.MemorySpace.VMEM)
    out = pl.pallas_call(
        _lstm_fc_kernel,
        out_shape=jax.ShapeDtypeStruct((1, OUTPUT_SIZE), jnp.float32),
        in_specs=[vmem, vmem, vmem, vmem, vmem, vmem],
        out_specs=vmem,
        cost_estimate=pl.CostEstimate(flops=flops,
                                      transcendentals=transcendentals,
                                      bytes_accessed=bytes_accessed),
    )(x, w_ih, w_hh, b, w_fc, b_fc)
    return out[0]


def init_torch_style_params(key, input_size=INPUT_SIZE, hidden_size=HIDDEN_SIZE,
                            output_size=OUTPUT_SIZE):
    """PyTorch-layout parameters: weight_ih (4H,I), weight_hh (4H,H),
    bias_ih/bias_hh (4H,) in gate order [i,f,g,o]; fc weight (O,H), fc bias (O,)."""
    ks = jax.random.split(key, 6)
    bound = 1.0 / (hidden_size ** 0.5)

    def u(k, shape):
        return jax.random.uniform(k, shape, jnp.float32, -bound, bound)

    weight_ih = u(ks[0], (4 * hidden_size, input_size))
    weight_hh = u(ks[1], (4 * hidden_size, hidden_size))
    bias_ih = u(ks[2], (4 * hidden_size,))
    bias_hh = u(ks[3], (4 * hidden_size,))
    fc_w = u(ks[4], (output_size, hidden_size))
    fc_b = u(ks[5], (output_size,))
    return (weight_ih, weight_hh, bias_ih, bias_hh, fc_w, fc_b)


def prepare_params(torch_params, hp=HP):
    """Transpose, reorder gates [i,f,g,o] -> [i,f,o,g], and zero-pad H -> HP."""
    weight_ih, weight_hh, bias_ih, bias_hh, fc_w, fc_b = torch_params
    H = weight_hh.shape[1]

    def reorder(w):                     # w: (4H, X) -> gate order [i, f, o, g]
        wi, wf, wg, wo = jnp.split(w, 4, axis=0)
        return jnp.concatenate([wi, wf, wo, wg], axis=0)

    def pad_gate_rows(w):               # w: (4H, X) -> (4*hp, X), per-gate zero pad
        parts = jnp.split(w, 4, axis=0)
        parts = [jnp.pad(p, ((0, hp - H), (0, 0))) for p in parts]
        return jnp.concatenate(parts, axis=0)

    w_ih = pad_gate_rows(reorder(weight_ih))                 # (4*HP, I)
    w_hh = pad_gate_rows(reorder(weight_hh))                 # (4*HP, H)
    b = pad_gate_rows(reorder((bias_ih + bias_hh)[:, None])) # (4*HP, 1)

    wih_k = w_ih.T                                           # (I, 4*HP)
    whh_k = jnp.pad(w_hh.T, ((0, hp - H), (0, 0)))           # (HP, 4*HP), zero rows
    b_k = b.T                                                # (1, 4*HP)
    wfc_k = jnp.pad(fc_w.T, ((0, hp - H), (0, 0)))           # (HP, O), zero rows
    bfc_k = fc_b[None, :]                                    # (1, O)
    return (wih_k, whh_k, b_k, wfc_k, bfc_k)


def _reference(input_seq, torch_params):
    """Pure-JAX mirror of the PyTorch forward (PyTorch layout & gate order)."""
    weight_ih, weight_hh, bias_ih, bias_hh, fc_w, fc_b = torch_params
    H = weight_hh.shape[1]

    def step(carry, x_t):
        h, c = carry
        gates = weight_ih @ x_t + weight_hh @ h + bias_ih + bias_hh   # (4H,)
        i_g = jax.nn.sigmoid(gates[0 * H:1 * H])
        f_g = jax.nn.sigmoid(gates[1 * H:2 * H])
        g_g = jnp.tanh(gates[2 * H:3 * H])
        o_g = jax.nn.sigmoid(gates[3 * H:4 * H])
        c = f_g * c + i_g * g_g
        h = o_g * jnp.tanh(c)
        return (h, c), None

    h0 = jnp.zeros((H,), jnp.float32)
    c0 = jnp.zeros((H,), jnp.float32)
    (h, _), _ = lax.scan(step, (h0, c0), input_seq)
    return fc_w @ h + fc_b


if __name__ == "__main__":
    key = jax.random.PRNGKey(0)
    k_param, k_in = jax.random.split(key)

    torch_params = init_torch_style_params(k_param)
    kernel_params = prepare_params(torch_params)
    input_seq = jax.random.normal(k_in, (SEQ_LEN, INPUT_SIZE), jnp.float32)

    out = jax.block_until_ready(lstm_model_forward(input_seq, kernel_params))
    ref = jax.block_until_ready(_reference(input_seq, torch_params))

    assert out.shape == (OUTPUT_SIZE,)
    assert jnp.allclose(out, ref, atol=1e-5, rtol=1e-5), (out, ref)
    print("KERNEL_OK")
</pallas_src>

<mosaic_0001>
module attributes {stable_mosaic.version = 11 : i64} {
  func.func @_lstm_fc_kernel(%arg0: memref<8x3xf32, #tpu.memory_space<vmem>>, %arg1: memref<3x512xf32, #tpu.memory_space<vmem>>, %arg2: memref<128x512xf32, #tpu.memory_space<vmem>>, %arg3: memref<1x512xf32, #tpu.memory_space<vmem>>, %arg4: memref<128x3xf32, #tpu.memory_space<vmem>>, %arg5: memref<1x3xf32, #tpu.memory_space<vmem>>, %arg6: memref<1x3xf32, #tpu.memory_space<vmem>>) attributes {dimension_semantics = [], scalar_prefetch = 0 : i64, scratch_operands = 0 : i64, tpu.core_type = #tpu.core_type<tc>} {
    %c0 = arith.constant 0 : index
    %c0_0 = arith.constant 0 : index
    %0 = vector.load %arg2[%c0, %c0_0] : memref<128x512xf32, #tpu.memory_space<vmem>>, vector<128x512xf32>
    %c0_1 = arith.constant 0 : index
    %c0_2 = arith.constant 0 : index
    %1 = vector.load %arg0[%c0_1, %c0_2] : memref<8x3xf32, #tpu.memory_space<vmem>>, vector<8x3xf32>
    %c0_3 = arith.constant 0 : index
    %c0_4 = arith.constant 0 : index
    %2 = vector.load %arg1[%c0_3, %c0_4] : memref<3x512xf32, #tpu.memory_space<vmem>>, vector<3x512xf32>
    %cst = arith.constant dense<0.000000e+00> : vector<8x512xf32>
    %3 = tpu.matmul %1, %2, %cst {dimension_numbers = #tpu.dot_dimension_numbers<[1], [0], [0], [1], [0, 0, 1, 1], [], []>} : vector<8x3xf32>, vector<3x512xf32>, vector<8x512xf32> -> vector<8x512xf32>
    %c0_5 = arith.constant 0 : index
    %c0_6 = arith.constant 0 : index
    %4 = vector.load %arg3[%c0_5, %c0_6] : memref<1x512xf32, #tpu.memory_space<vmem>>, vector<1x512xf32>
    %5 = vector.broadcast %4 : vector<1x512xf32> to vector<8x512xf32>
    %6 = arith.addf %3, %5 : vector<8x512xf32>
    %cst_7 = arith.constant 0.000000e+00 : f32
    %7 = vector.broadcast %cst_7 : f32 to vector<1x128xf32>
    %cst_8 = arith.constant 0.000000e+00 : f32
    %8 = vector.broadcast %cst_8 : f32 to vector<1x128xf32>
    %9 = vector.extract_strided_slice %6 {offsets = [0, 0], sizes = [1, 512], strides = [1, 1]} : vector<8x512xf32> to vector<1x512xf32>
    %cst_9 = arith.constant dense<0.000000e+00> : vector<1x512xf32>
    %10 = tpu.matmul %7, %0, %cst_9 {dimension_numbers = #tpu.dot_dimension_numbers<[1], [0], [0], [1], [0, 0, 1, 1], [], []>} : vector<1x128xf32>, vector<128x512xf32>, vector<1x512xf32> -> vector<1x512xf32>
    %11 = arith.addf %9, %10 : vector<1x512xf32>
    %12 = vector.extract_strided_slice %11 {offsets = [0, 0], sizes = [1, 384], strides = [1, 1]} : vector<1x512xf32> to vector<1x384xf32>
    %13 = arith.negf %12 : vector<1x384xf32>
    %14 = math.exp %13 : vector<1x384xf32>
    %cst_10 = arith.constant 1.000000e+00 : f32
    %15 = vector.broadcast %cst_10 : f32 to vector<1x384xf32>
    %16 = arith.addf %15, %14 : vector<1x384xf32>
    %17 = arith.divf %15, %16 : vector<1x384xf32>
    %18 = vector.extract_strided_slice %11 {offsets = [0, 384], sizes = [1, 128], strides = [1, 1]} : vector<1x512xf32> to vector<1x128xf32>
    %19 = math.tanh %18 : vector<1x128xf32>
    %20 = vector.extract_strided_slice %17 {offsets = [0, 0], sizes = [1, 128], strides = [1, 1]} : vector<1x384xf32> to vector<1x128xf32>
    %21 = vector.extract_strided_slice %17 {offsets = [0, 128], sizes = [1, 128], strides = [1, 1]} : vector<1x384xf32> to vector<1x128xf32>
    %22 = vector.extract_strided_slice %17 {offsets = [0, 256], sizes = [1, 128], strides = [1, 1]} : vector<1x384xf32> to vector<1x128xf32>
    %23 = arith.mulf %21, %8 : vector<1x128xf32>
    %24 = arith.mulf %20, %19 : vector<1x128xf32>
    %25 = arith.addf %23, %24 : vector<1x128xf32>
    %26 = math.tanh %25 : vector<1x128xf32>
    %27 = arith.mulf %22, %26 : vector<1x128xf32>
    %28 = vector.extract_strided_slice %6 {offsets = [1, 0], sizes = [1, 512], strides = [1, 1]} : vector<8x512xf32> to vector<1x512xf32>
    %cst_11 = arith.constant dense<0.000000e+00> : vector<1x512xf32>
    %29 = tpu.matmul %27, %0, %cst_11 {dimension_numbers = #tpu.dot_dimension_numbers<[1], [0], [0], [1], [0, 0, 1, 1], [], []>} : vector<1x128xf32>, vector<128x512xf32>, vector<1x512xf32> -> vector<1x512xf32>
    %30 = arith.addf %28, %29 : vector<1x512xf32>
    %31 = vector.extract_strided_slice %30 {offsets = [0, 0], sizes = [1, 384], strides = [1, 1]} : vector<1x512xf32> to vector<1x384xf32>
    %32 = arith.negf %31 : vector<1x384xf32>
    %33 = math.exp %32 : vector<1x384xf32>
    %cst_12 = arith.constant 1.000000e+00 : f32
    %34 = vector.broadcast %cst_12 : f32 to vector<1x384xf32>
    %35 = arith.addf %34, %33 : vector<1x384xf32>
    %36 = arith.divf %34, %35 : vector<1x384xf32>
    %37 = vector.extract_strided_slice %30 {offsets = [0, 384], sizes = [1, 128], strides = [1, 1]} : vector<1x512xf32> to vector<1x128xf32>
    %38 = math.tanh %37 : vector<1x128xf32>
    %39 = vector.extract_strided_slice %36 {offsets = [0, 0], sizes = [1, 128], strides = [1, 1]} : vector<1x384xf32> to vector<1x128xf32>
    %40 = vector.extract_strided_slice %36 {offsets = [0, 128], sizes = [1, 128], strides = [1, 1]} : vector<1x384xf32> to vector<1x128xf32>
    %41 = vector.extract_strided_slice %36 {offsets = [0, 256], sizes = [1, 128], strides = [1, 1]} : vector<1x384xf32> to vector<1x128xf32>
    %42 = arith.mulf %40, %25 : vector<1x128xf32>
    %43 = arith.mulf %39, %38 : vector<1x128xf32>
    %44 = arith.addf %42, %43 : vector<1x128xf32>
    %45 = math.tanh %44 : vector<1x128xf32>
    %46 = arith.mulf %41, %45 : vector<1x128xf32>
    %47 = vector.extract_strided_slice %6 {offsets = [2, 0], sizes = [1, 512], strides = [1, 1]} : vector<8x512xf32> to vector<1x512xf32>
    %cst_13 = arith.constant dense<0.000000e+00> : vector<1x512xf32>
    %48 = tpu.matmul %46, %0, %cst_13 {dimension_numbers = #tpu.dot_dimension_numbers<[1], [0], [0], [1], [0, 0, 1, 1], [], []>} : vector<1x128xf32>, vector<128x512xf32>, vector<1x512xf32> -> vector<1x512xf32>
    %49 = arith.addf %47, %48 : vector<1x512xf32>
    %50 = vector.extract_strided_slice %49 {offsets = [0, 0], sizes = [1, 384], strides = [1, 1]} : vector<1x512xf32> to vector<1x384xf32>
    %51 = arith.negf %50 : vector<1x384xf32>
    %52 = math.exp %51 : vector<1x384xf32>
    %cst_14 = arith.constant 1.000000e+00 : f32
    %53 = vector.broadcast %cst_14 : f32 to vector<1x384xf32>
    %54 = arith.addf %53, %52 : vector<1x384xf32>
    %55 = arith.divf %53, %54 : vector<1x384xf32>
    %56 = vector.extract_strided_slice %49 {offsets = [0, 384], sizes = [1, 128], strides = [1, 1]} : vector<1x512xf32> to vector<1x128xf32>
    %57 = math.tanh %56 : vector<1x128xf32>
    %58 = vector.extract_strided_slice %55 {offsets = [0, 0], sizes = [1, 128], strides = [1, 1]} : vector<1x384xf32> to vector<1x128xf32>
    %59 = vector.extract_strided_slice %55 {offsets = [0, 128], sizes = [1, 128], strides = [1, 1]} : vector<1x384xf32> to vector<1x128xf32>
    %60 = vector.extract_strided_slice %55 {offsets = [0, 256], sizes = [1, 128], strides = [1, 1]} : vector<1x384xf32> to vector<1x128xf32>
    %61 = arith.mulf %59, %44 : vector<1x128xf32>
    %62 = arith.mulf %58, %57 : vector<1x128xf32>
    %63 = arith.addf %61, %62 : vector<1x128xf32>
    %64 = math.tanh %63 : vector<1x128xf32>
    %65 = arith.mulf %60, %64 : vector<1x128xf32>
    %66 = vector.extract_strided_slice %6 {offsets = [3, 0], sizes = [1, 512], strides = [1, 1]} : vector<8x512xf32> to vector<1x512xf32>
    %cst_15 = arith.constant dense<0.000000e+00> : vector<1x512xf32>
    %67 = tpu.matmul %65, %0, %cst_15 {dimension_numbers = #tpu.dot_dimension_numbers<[1], [0], [0], [1], [0, 0, 1, 1], [], []>} : vector<1x128xf32>, vector<128x512xf32>, vector<1x512xf32> -> vector<1x512xf32>
    %68 = arith.addf %66, %67 : vector<1x512xf32>
    %69 = vector.extract_strided_slice %68 {offsets = [0, 0], sizes = [1, 384], strides = [1, 1]} : vector<1x512xf32> to vector<1x384xf32>
    %70 = arith.negf %69 : vector<1x384xf32>
    %71 = math.exp %70 : vector<1x384xf32>
    %cst_16 = arith.constant 1.000000e+00 : f32
    %72 = vector.broadcast %cst_16 : f32 to vector<1x384xf32>
    %73 = arith.addf %72, %71 : vector<1x384xf32>
    %74 = arith.divf %72, %73 : vector<1x384xf32>
    %75 = vector.extract_strided_slice %68 {offsets = [0, 384], sizes = [1, 128], strides = [1, 1]} : vector<1x512xf32> to vector<1x128xf32>
    %76 = math.tanh %75 : vector<1x128xf32>
    %77 = vector.extract_strided_slice %74 {offsets = [0, 0], sizes = [1, 128], strides = [1, 1]} : vector<1x384xf32> to vector<1x128xf32>
    %78 = vector.extract_strided_slice %74 {offsets = [0, 128], sizes = [1, 128], strides = [1, 1]} : vector<1x384xf32> to vector<1x128xf32>
    %79 = vector.extract_strided_slice %74 {offsets = [0, 256], sizes = [1, 128], strides = [1, 1]} : vector<1x384xf32> to vector<1x128xf32>
    %80 = arith.mulf %78, %63 : vector<1x128xf32>
    %81 = arith.mulf %77, %76 : vector<1x128xf32>
    %82 = arith.addf %80, %81 : vector<1x128xf32>
    %83 = math.tanh %82 : vector<1x128xf32>
    %84 = arith.mulf %79, %83 : vector<1x128xf32>
    %85 = vector.extract_strided_slice %6 {offsets = [4, 0], sizes = [1, 512], strides = [1, 1]} : vector<8x512xf32> to vector<1x512xf32>
    %cst_17 = arith.constant dense<0.000000e+00> : vector<1x512xf32>
    %86 = tpu.matmul %84, %0, %cst_17 {dimension_numbers = #tpu.dot_dimension_numbers<[1], [0], [0], [1], [0, 0, 1, 1], [], []>} : vector<1x128xf32>, vector<128x512xf32>, vector<1x512xf32> -> vector<1x512xf32>
    %87 = arith.addf %85, %86 : vector<1x512xf32>
    %88 = vector.extract_strided_slice %87 {offsets = [0, 0], sizes = [1, 384], strides = [1, 1]} : vector<1x512xf32> to vector<1x384xf32>
    %89 = arith.negf %88 : vector<1x384xf32>
    %90 = math.exp %89 : vector<1x384xf32>
    %cst_18 = arith.constant 1.000000e+00 : f32
    %91 = vector.broadcast %cst_18 : f32 to vector<1x384xf32>
    %92 = arith.addf %91, %90 : vector<1x384xf32>
    %93 = arith.divf %91, %92 : vector<1x384xf32>
    %94 = vector.extract_strided_slice %87 {offsets = [0, 384], sizes = [1, 128], strides = [1, 1]} : vector<1x512xf32> to vector<1x128xf32>
    %95 = math.tanh %94 : vector<1x128xf32>
    %96 = vector.extract_strided_slice %93 {offsets = [0, 0], sizes = [1, 128], strides = [1, 1]} : vector<1x384xf32> to vector<1x128xf32>
    %97 = vector.extract_strided_slice %93 {offsets = [0, 128], sizes = [1, 128], strides = [1, 1]} : vector<1x384xf32> to vector<1x128xf32>
    %98 = vector.extract_strided_slice %93 {offsets = [0, 256], sizes = [1, 128], strides = [1, 1]} : vector<1x384xf32> to vector<1x128xf32>
    %99 = arith.mulf %97, %82 : vector<1x128xf32>
    %100 = arith.mulf %96, %95 : vector<1x128xf32>
    %101 = arith.addf %99, %100 : vector<1x128xf32>
    %102 = math.tanh %101 : vector<1x128xf32>
    %103 = arith.mulf %98, %102 : vector<1x128xf32>
    %104 = vector.extract_strided_slice %6 {offsets = [5, 0], sizes = [1, 512], strides = [1, 1]} : vector<8x512xf32> to vector<1x512xf32>
    %cst_19 = arith.constant dense<0.000000e+00> : vector<1x512xf32>
    %105 = tpu.matmul %103, %0, %cst_19 {dimension_numbers = #tpu.dot_dimension_numbers<[1], [0], [0], [1], [0, 0, 1, 1], [], []>} : vector<1x128xf32>, vector<128x512xf32>, vector<1x512xf32> -> vector<1x512xf32>
    %106 = arith.addf %104, %105 : vector<1x512xf32>
    %107 = vector.extract_strided_slice %106 {offsets = [0, 0], sizes = [1, 384], strides = [1, 1]} : vector<1x512xf32> to vector<1x384xf32>
    %108 = arith.negf %107 : vector<1x384xf32>
    %109 = math.exp %108 : vector<1x384xf32>
    %cst_20 = arith.constant 1.000000e+00 : f32
    %110 = vector.broadcast %cst_20 : f32 to vector<1x384xf32>
    %111 = arith.addf %110, %109 : vector<1x384xf32>
    %112 = arith.divf %110, %111 : vector<1x384xf32>
    %113 = vector.extract_strided_slice %106 {offsets = [0, 384], sizes = [1, 128], strides = [1, 1]} : vector<1x512xf32> to vector<1x128xf32>
    %114 = math.tanh %113 : vector<1x128xf32>
    %115 = vector.extract_strided_slice %112 {offsets = [0, 0], sizes = [1, 128], strides = [1, 1]} : vector<1x384xf32> to vector<1x128xf32>
    %116 = vector.extract_strided_slice %112 {offsets = [0, 128], sizes = [1, 128], strides = [1, 1]} : vector<1x384xf32> to vector<1x128xf32>
    %117 = vector.extract_strided_slice %112 {offsets = [0, 256], sizes = [1, 128], strides = [1, 1]} : vector<1x384xf32> to vector<1x128xf32>
    %118 = arith.mulf %116, %101 : vector<1x128xf32>
    %119 = arith.mulf %115, %114 : vector<1x128xf32>
    %120 = arith.addf %118, %119 : vector<1x128xf32>
    %121 = math.tanh %120 : vector<1x128xf32>
    %122 = arith.mulf %117, %121 : vector<1x128xf32>
    %123 = vector.extract_strided_slice %6 {offsets = [6, 0], sizes = [1, 512], strides = [1, 1]} : vector<8x512xf32> to vector<1x512xf32>
    %cst_21 = arith.constant dense<0.000000e+00> : vector<1x512xf32>
    %124 = tpu.matmul %122, %0, %cst_21 {dimension_numbers = #tpu.dot_dimension_numbers<[1], [0], [0], [1], [0, 0, 1, 1], [], []>} : vector<1x128xf32>, vector<128x512xf32>, vector<1x512xf32> -> vector<1x512xf32>
    %125 = arith.addf %123, %124 : vector<1x512xf32>
    %126 = vector.extract_strided_slice %125 {offsets = [0, 0], sizes = [1, 384], strides = [1, 1]} : vector<1x512xf32> to vector<1x384xf32>
    %127 = arith.negf %126 : vector<1x384xf32>
    %128 = math.exp %127 : vector<1x384xf32>
    %cst_22 = arith.constant 1.000000e+00 : f32
    %129 = vector.broadcast %cst_22 : f32 to vector<1x384xf32>
    %130 = arith.addf %129, %128 : vector<1x384xf32>
    %131 = arith.divf %129, %130 : vector<1x384xf32>
    %132 = vector.extract_strided_slice %125 {offsets = [0, 384], sizes = [1, 128], strides = [1, 1]} : vector<1x512xf32> to vector<1x128xf32>
    %133 = math.tanh %132 : vector<1x128xf32>
    %134 = vector.extract_strided_slice %131 {offsets = [0, 0], sizes = [1, 128], strides = [1, 1]} : vector<1x384xf32> to vector<1x128xf32>
    %135 = vector.extract_strided_slice %131 {offsets = [0, 128], sizes = [1, 128], strides = [1, 1]} : vector<1x384xf32> to vector<1x128xf32>
    %136 = vector.extract_strided_slice %131 {offsets = [0, 256], sizes = [1, 128], strides = [1, 1]} : vector<1x384xf32> to vector<1x128xf32>
    %137 = arith.mulf %135, %120 : vector<1x128xf32>
    %138 = arith.mulf %134, %133 : vector<1x128xf32>
    %139 = arith.addf %137, %138 : vector<1x128xf32>
    %140 = math.tanh %139 : vector<1x128xf32>
    %141 = arith.mulf %136, %140 : vector<1x128xf32>
    %142 = vector.extract_strided_slice %6 {offsets = [7, 0], sizes = [1, 512], strides = [1, 1]} : vector<8x512xf32> to vector<1x512xf32>
    %cst_23 = arith.constant dense<0.000000e+00> : vector<1x512xf32>
    %143 = tpu.matmul %141, %0, %cst_23 {dimension_numbers = #tpu.dot_dimension_numbers<[1], [0], [0], [1], [0, 0, 1, 1], [], []>} : vector<1x128xf32>, vector<128x512xf32>, vector<1x512xf32> -> vector<1x512xf32>
    %144 = arith.addf %142, %143 : vector<1x512xf32>
    %145 = vector.extract_strided_slice %144 {offsets = [0, 0], sizes = [1, 384], strides = [1, 1]} : vector<1x512xf32> to vector<1x384xf32>
    %146 = arith.negf %145 : vector<1x384xf32>
    %147 = math.exp %146 : vector<1x384xf32>
    %cst_24 = arith.constant 1.000000e+00 : f32
    %148 = vector.broadcast %cst_24 : f32 to vector<1x384xf32>
    %149 = arith.addf %148, %147 : vector<1x384xf32>
    %150 = arith.divf %148, %149 : vector<1x384xf32>
    %151 = vector.extract_strided_slice %144 {offsets = [0, 384], sizes = [1, 128], strides = [1, 1]} : vector<1x512xf32> to vector<1x128xf32>
    %152 = math.tanh %151 : vector<1x128xf32>
    %153 = vector.extract_strided_slice %150 {offsets = [0, 0], sizes = [1, 128], strides = [1, 1]} : vector<1x384xf32> to vector<1x128xf32>
    %154 = vector.extract_strided_slice %150 {offsets = [0, 128], sizes = [1, 128], strides = [1, 1]} : vector<1x384xf32> to vector<1x128xf32>
    %155 = vector.extract_strided_slice %150 {offsets = [0, 256], sizes = [1, 128], strides = [1, 1]} : vector<1x384xf32> to vector<1x128xf32>
    %156 = arith.mulf %154, %139 : vector<1x128xf32>
    %157 = arith.mulf %153, %152 : vector<1x128xf32>
    %158 = arith.addf %156, %157 : vector<1x128xf32>
    %159 = math.tanh %158 : vector<1x128xf32>
    %160 = arith.mulf %155, %159 : vector<1x128xf32>
    %c0_25 = arith.constant 0 : index
    %c0_26 = arith.constant 0 : index
    %161 = vector.load %arg4[%c0_25, %c0_26] : memref<128x3xf32, #tpu.memory_space<vmem>>, vector<128x3xf32>
    %cst_27 = arith.constant dense<0.000000e+00> : vector<1x3xf32>
    %162 = tpu.matmul %160, %161, %cst_27 {dimension_numbers = #tpu.dot_dimension_numbers<[1], [0], [0], [1], [0, 0, 1, 1], [], []>} : vector<1x128xf32>, vector<128x3xf32>, vector<1x3xf32> -> vector<1x3xf32>
    %c0_28 = arith.constant 0 : index
    %c0_29 = arith.constant 0 : index
    %163 = vector.load %arg5[%c0_28, %c0_29] : memref<1x3xf32, #tpu.memory_space<vmem>>, vector<1x3xf32>
    %164 = arith.addf %162, %163 : vector<1x3xf32>
    %c0_30 = arith.constant 0 : index
    %c0_31 = arith.constant 0 : index
    %165 = vector.load %arg6[%c0_30, %c0_31] : memref<1x3xf32, #tpu.memory_space<vmem>>, vector<1x3xf32>
    tpu.vector_store %arg6[%c0_30, %c0_31], %164 {strides = array<i32>} : memref<1x3xf32, #tpu.memory_space<vmem>>, vector<1x3xf32>,
    return
  }
}

</mosaic_0001>

<llo_original>
// kernel: tpu_custom_call.1
$region0: #{tpu_custom_call.1}
  #allocation0 [shape = 'u32[]', space=smem, size = 0x4, offset = 0x4, fixed_abs, tag = 'smem constant byte address 0x4 - core index']
  #allocation1 [shape = 'u32[72,128]{1,0:T(1,128)}', space=vmem, size = 0x9000, scoped, tag = 'internal scratch']
  %s0 = inlined_call_operand.vmem [shape: f32[8,3], index: 0, kind: input, shape index: {}]
  %s1 = inlined_call_operand.vmem [shape: f32[3,512], index: 1, kind: input, shape index: {}]
  %s2 = inlined_call_operand.hbm [shape: f32[128,512], index: 2, kind: input, shape index: {}]
  %s3 = inlined_call_operand.vmem [shape: f32[1,512], index: 3, kind: input, shape index: {}]
  %s4 = inlined_call_operand.vmem [shape: f32[128,3], index: 4, kind: input, shape index: {}]
  %s5 = inlined_call_operand.vmem [shape: f32[1,3], index: 5, kind: input, shape index: {}]
  %s6 = inlined_call_operand.hbm [shape: f32[1,3], index: 6, kind: output, shape index: {}]
  %s7 = sld [smem:[#allocation0]]
  $region38: #{tpu_custom_call.1} parent=0
    _
  %s9 = ssub.s32 1, %s7
  %s10 = scalar_select 0, %s9, %s7
  $region1: #{tpu_custom_call.1} parent=0
    #allocation2 [shape = 'u8[262144]{0}', space=vmem, size = 0x40000, scoped, tag = 'input window, operand 2, single buffered']
    #allocation3 [shape = 's32[1]{0}', space=sflag, size = 0x4, scoped, tag = 'scoped memory for tpu_custom_call.1']
    #allocation4 [shape = 's32[1]{0}', space=sflag, size = 0x4, scoped, tag = 'scoped memory for tpu_custom_call.1']
    #allocation5 [shape = 'u8[512]{0}', space=vmem, size = 0x400, scoped, tag = 'output window, operand 0, single buffered']
    %11 = vsyncpa [#allocation3], 0
    %12 = vsyncpa [#allocation4], 0
    // Predicated region
    $region2: #{tpu_custom_call.1} parent=1 // pred_check
      _
    $region3: #{tpu_custom_call.1} parent=1 // pred_check_branch
      %14 = sbr.rel (0) target = $region5
    $region4: #{tpu_custom_call.1} parent=1 // pred_region
      _
    $region5: #{tpu_custom_call.1} parent=1 // pred_fallthru
      _
    // Predicated region
    $region6: #{tpu_custom_call.1} parent=1 // pred_check
      _
    $region7: #{tpu_custom_call.1} parent=1 // pred_check_branch
      %16 = sbr.rel (0) target = $region9
    $region8: #{tpu_custom_call.1} parent=1 // pred_region
      _
    $region9: #{tpu_custom_call.1} parent=1 // pred_fallthru
      _
    // Predicated region
    $region10: #{tpu_custom_call.1} parent=1 // pred_check
      _
    $region11: #{tpu_custom_call.1} parent=1 // pred_check_branch
      %18 = sbr.rel (0) target = $region13
    $region12: #{tpu_custom_call.1} parent=1 // pred_region
      %20 = vsyncadd [#allocation3], 0
      %s21 = sshll.u32 %s2, 4
      %s22 = int_to_ptr.hbm [resolvable:$true] %s21
      %s23 = sshll.u32 [#allocation2], 4
      %s24 = int_to_ptr.vmem [resolvable:$true] %s23
      %29 = dma.hbm_to_vmem [thread:$0]  %s22, 8192, %s24, [#allocation3], 512, 512, 32
    $region13: #{tpu_custom_call.1} parent=1 // pred_fallthru
      _
    // Predicated region
    $region14: #{tpu_custom_call.1} parent=1 // pred_check
      _
    $region15: #{tpu_custom_call.1} parent=1 // pred_check_branch
      %31 = sbr.rel (0) target = $region17
    $region16: #{tpu_custom_call.1} parent=1 // pred_region
      _
    $region17: #{tpu_custom_call.1} parent=1 // pred_fallthru
      _
    // Predicated region
    $region18: #{tpu_custom_call.1} parent=1 // pred_check
      _
    $region19: #{tpu_custom_call.1} parent=1 // pred_check_branch
      %33 = sbr.rel (0) target = $region21
    $region20: #{tpu_custom_call.1} parent=1 // pred_region
      _
    $region21: #{tpu_custom_call.1} parent=1 // pred_fallthru
      _
    // Predicated region
    $region22: #{tpu_custom_call.1} parent=1 // pred_check
      _
    $region23: #{tpu_custom_call.1} parent=1 // pred_check_branch
      %35 = sbr.rel (0) target = $region25
    $region24: #{tpu_custom_call.1} parent=1 // pred_region
      _
    $region25: #{tpu_custom_call.1} parent=1 // pred_fallthru
      _
    // Predicated region
    $region26: #{tpu_custom_call.1} parent=1 // pred_check
      _
    $region27: #{tpu_custom_call.1} parent=1 // pred_check_branch
      %37 = sbr.rel (0) target = $region29
    $region28: #{tpu_custom_call.1} parent=1 // pred_region
      %39 = dma.done [#allocation3], 8192
    $region29: #{tpu_custom_call.1} parent=1 // pred_fallthru
      _
    %v40 = vld [vmem:[#allocation2] sm:$0xff]
    %v41 = vld [vmem:[#allocation2 + $0x8] sm:$0xff]
    %v42 = vld [vmem:[#allocation2 + $0x10] sm:$0xff]
    %v43 = vld [vmem:[#allocation2 + $0x18] sm:$0xff]
    %v44 = vld [vmem:[#allocation2 + $0x20] sm:$0xff]
    %v45 = vld [vmem:[#allocation2 + $0x28] sm:$0xff]
    %v46 = vld [vmem:[#allocation2 + $0x30] sm:$0xff]
    %v47 = vld [vmem:[#allocation2 + $0x38] sm:$0xff]
    %v48 = vld [vmem:[#allocation2 + $0x40] sm:$0xff]
    %v49 = vld [vmem:[#allocation2 + $0x48] sm:$0xff]
    %v50 = vld [vmem:[#allocation2 + $0x50] sm:$0xff]
    %v51 = vld [vmem:[#allocation2 + $0x58] sm:$0xff]
    %v52 = vld [vmem:[#allocation2 + $0x60] sm:$0xff]
    %v53 = vld [vmem:[#allocation2 + $0x68] sm:$0xff]
    %v54 = vld [vmem:[#allocation2 + $0x70] sm:$0xff]
    %v55 = vld [vmem:[#allocation2 + $0x78] sm:$0xff]
    %v56 = vld [vmem:[#allocation2 + $0x80] sm:$0xff]
    %v57 = vld [vmem:[#allocation2 + $0x88] sm:$0xff]
    %v58 = vld [vmem:[#allocation2 + $0x90] sm:$0xff]
    %v59 = vld [vmem:[#allocation2 + $0x98] sm:$0xff]
    %v60 = vld [vmem:[#allocation2 + $0xa0] sm:$0xff]
    %v61 = vld [vmem:[#allocation2 + $0xa8] sm:$0xff]
    %v62 = vld [vmem:[#allocation2 + $0xb0] sm:$0xff]
    %v63 = vld [vmem:[#allocation2 + $0xb8] sm:$0xff]
    %v64 = vld [vmem:[#allocation2 + $0xc0] sm:$0xff]
    %v65 = vld [vmem:[#allocation2 + $0xc8] sm:$0xff]
    %v66 = vld [vmem:[#allocation2 + $0xd0] sm:$0xff]
    %v67 = vld [vmem:[#allocation2 + $0xd8] sm:$0xff]
    %v68 = vld [vmem:[#allocation2 + $0xe0] sm:$0xff]
    %v69 = vld [vmem:[#allocation2 + $0xe8] sm:$0xff]
    %v70 = vld [vmem:[#allocation2 + $0xf0] sm:$0xff]
    %v71 = vld [vmem:[#allocation2 + $0xf8] sm:$0xff]
    %v72 = vld [vmem:[#allocation2 + $0x100] sm:$0xff]
    %v73 = vld [vmem:[#allocation2 + $0x108] sm:$0xff]
    %v74 = vld [vmem:[#allocation2 + $0x110] sm:$0xff]
    %v75 = vld [vmem:[#allocation2 + $0x118] sm:$0xff]
    %v76 = vld [vmem:[#allocation2 + $0x120] sm:$0xff]
    %v77 = vld [vmem:[#allocation2 + $0x128] sm:$0xff]
    %v78 = vld [vmem:[#allocation2 + $0x130] sm:$0xff]
    %v79 = vld [vmem:[#allocation2 + $0x138] sm:$0xff]
    %v80 = vld [vmem:[#allocation2 + $0x140] sm:$0xff]
    %v81 = vld [vmem:[#allocation2 + $0x148] sm:$0xff]
    %v82 = vld [vmem:[#allocation2 + $0x150] sm:$0xff]
    %v83 = vld [vmem:[#allocation2 + $0x158] sm:$0xff]
    %v84 = vld [vmem:[#allocation2 + $0x160] sm:$0xff]
    %v85 = vld [vmem:[#allocation2 + $0x168] sm:$0xff]
    %v86 = vld [vmem:[#allocation2 + $0x170] sm:$0xff]
    %v87 = vld [vmem:[#allocation2 + $0x178] sm:$0xff]
    %v88 = vld [vmem:[#allocation2 + $0x180] sm:$0xff]
    %v89 = vld [vmem:[#allocation2 + $0x188] sm:$0xff]
    %v90 = vld [vmem:[#allocation2 + $0x190] sm:$0xff]
    %v91 = vld [vmem:[#allocation2 + $0x198] sm:$0xff]
    %v92 = vld [vmem:[#allocation2 + $0x1a0] sm:$0xff]
    %v93 = vld [vmem:[#allocation2 + $0x1a8] sm:$0xff]
    %v94 = vld [vmem:[#allocation2 + $0x1b0] sm:$0xff]
    %v95 = vld [vmem:[#allocation2 + $0x1b8] sm:$0xff]
    %v96 = vld [vmem:[#allocation2 + $0x1c0] sm:$0xff]
    %v97 = vld [vmem:[#allocation2 + $0x1c8] sm:$0xff]
    %v98 = vld [vmem:[#allocation2 + $0x1d0] sm:$0xff]
    %v99 = vld [vmem:[#allocation2 + $0x1d8] sm:$0xff]
    %v100 = vld [vmem:[#allocation2 + $0x1e0] sm:$0xff]
    %v101 = vld [vmem:[#allocation2 + $0x1e8] sm:$0xff]
    %v102 = vld [vmem:[#allocation2 + $0x1f0] sm:$0xff]
    %v103 = vld [vmem:[#allocation2 + $0x1f8] sm:$0xff]
    %v104 = vld [vmem:[%s0] sm:$0xff]
    %v105 = vld [vmem:[%s1] sm:$0x77]
    %v106 = vld [vmem:[%s1 + $0x8] sm:$0x77]
    %v107 = vld [vmem:[%s3] sm:$0xf]
    %v109 = vperm.slane %v107, 0
    %v110 = vperm.slane %v107, 1
    %v111 = vperm.slane %v107, 2
    %v112 = vperm.slane %v107, 3
    %119 = vst [vmem:[#allocation1] ss:$2 sm:$0xff] %v105
    %s120 = scalar_lea.vmem [#allocation1], 16
    %121 = vst [vmem:[%s120] ss:$2 sm:$0xff] %v106
    %v122 = vld.sshfl [vmem:[#allocation1] sm:$0xff pattern:$0x75316420]
    %v123 = vld.sshfl [vmem:[#allocation1 + $0x8] sm:$0xff pattern:$0x75316420]
    %v124 = vld.sshfl [vmem:[#allocation1 + $0x10] sm:$0xff pattern:$0x75316420]
    %v125 = vld.sshfl [vmem:[#allocation1 + $0x18] sm:$0xff pattern:$0x75316420]
    %vm126 = vcmask 23552
    %v128 = vsel %vm126, %v104, 0
    %vm130 = vcmask 1042432
    %v131 = vsel %vm130, %v122, 0
    %v133 = vsel %vm130, %v123, 0
    %v135 = vsel %vm130, %v124, 0
    %v137 = vsel %vm130, %v125, 0
    %139 = vmatpush.msra.mxu0 0.0
    %140 = vmatpush.msra.mxu0 0.0
    %141 = vmatpush.msra.mxu0 0.0
    %142 = vmatpush.msra.mxu0 0.0
    %143 = vmatpush.msra.mxu0 0.0
    %144 = vmatpush.msra.mxu0 0.0
    %145 = vmatpush.msra.mxu0 0.0
    %146 = vmatpush.msra.mxu0 0.0
    %147 = vmatpush.msra.mxu0 0.0
    %148 = vmatpush.msra.mxu0 0.0
    %149 = vmatpush.msra.mxu0 0.0
    %150 = vmatpush.msra.mxu0 0.0
    %151 = vmatpush.msra.mxu0 0.0
    %152 = vmatpush.msra.mxu0 0.0
    %153 = vmatpush.msra.mxu0 0.0
    %154 = vmatpush.msra.mxu0 %v131
    %155 = vmatmul.f32.gmra.mxu0 %v128
    %v156 = vpop.f32.mrf.mxu0
    %v157 = vadd.f32 %v109, %v156
    %158 = vdwg.mxu0
    %159 = vmatpush.msra.mxu0 0.0
    %160 = vmatpush.msra.mxu0 0.0
    %161 = vmatpush.msra.mxu0 0.0
    %162 = vmatpush.msra.mxu0 0.0
    %163 = vmatpush.msra.mxu0 0.0
    %164 = vmatpush.msra.mxu0 0.0
    %165 = vmatpush.msra.mxu0 0.0
    %166 = vmatpush.msra.mxu0 0.0
    %167 = vmatpush.msra.mxu0 0.0
    %168 = vmatpush.msra.mxu0 0.0
    %169 = vmatpush.msra.mxu0 0.0
    %170 = vmatpush.msra.mxu0 0.0
    %171 = vmatpush.msra.mxu0 0.0
    %172 = vmatpush.msra.mxu0 0.0
    %173 = vmatpush.msra.mxu0 0.0
    %174 = vmatpush.msra.mxu0 %v133
    %175 = vmatmul.f32.gmra.mxu0 %v128
    %v176 = vpop.f32.mrf.mxu0
    %v177 = vadd.f32 %v110, %v176
    %178 = vdwg.mxu0
    %179 = vmatpush.msra.mxu0 0.0
    %180 = vmatpush.msra.mxu0 0.0
    %181 = vmatpush.msra.mxu0 0.0
    %182 = vmatpush.msra.mxu0 0.0
    %183 = vmatpush.msra.mxu0 0.0
    %184 = vmatpush.msra.mxu0 0.0
    %185 = vmatpush.msra.mxu0 0.0
    %186 = vmatpush.msra.mxu0 0.0
    %187 = vmatpush.msra.mxu0 0.0
    %188 = vmatpush.msra.mxu0 0.0
    %189 = vmatpush.msra.mxu0 0.0
    %190 = vmatpush.msra.mxu0 0.0
    %191 = vmatpush.msra.mxu0 0.0
    %192 = vmatpush.msra.mxu0 0.0
    %193 = vmatpush.msra.mxu0 0.0
    %194 = vmatpush.msra.mxu0 %v135
    %195 = vmatmul.f32.gmra.mxu0 %v128
    %v196 = vpop.f32.mrf.mxu0
    %v197 = vadd.f32 %v111, %v196
    %198 = vdwg.mxu0
    %199 = vmatpush.msra.mxu0 0.0
    %200 = vmatpush.msra.mxu0 0.0
    %201 = vmatpush.msra.mxu0 0.0
    %202 = vmatpush.msra.mxu0 0.0
    %203 = vmatpush.msra.mxu0 0.0
    %204 = vmatpush.msra.mxu0 0.0
    %205 = vmatpush.msra.mxu0 0.0
    %206 = vmatpush.msra.mxu0 0.0
    %207 = vmatpush.msra.mxu0 0.0
    %208 = vmatpush.msra.mxu0 0.0
    %209 = vmatpush.msra.mxu0 0.0
    %210 = vmatpush.msra.mxu0 0.0
    %211 = vmatpush.msra.mxu0 0.0
    %212 = vmatpush.msra.mxu0 0.0
    %213 = vmatpush.msra.mxu0 0.0
    %214 = vmatpush.msra.mxu0 %v137
    %215 = vmatmul.f32.gmra.mxu0 %v128
    %v216 = vpop.f32.mrf.mxu0
    %v217 = vadd.f32 %v112, %v216
    %218 = vdwg.mxu0
    %219 = vmatpush.msra.mxu0 %v100
    %220 = vmatpush.msra.mxu0 %v96
    %221 = vmatpush.msra.mxu0 %v92
    %222 = vmatpush.msra.mxu0 %v88
    %223 = vmatpush.msra.mxu0 %v84
    %224 = vmatpush.msra.mxu0 %v80
    %225 = vmatpush.msra.mxu0 %v76
    %226 = vmatpush.msra.mxu0 %v72
    %227 = vmatpush.msra.mxu0 %v68
    %228 = vmatpush.msra.mxu0 %v64
    %229 = vmatpush.msra.mxu0 %v60
    %230 = vmatpush.msra.mxu0 %v56
    %231 = vmatpush.msra.mxu0 %v52
    %232 = vmatpush.msra.mxu0 %v48
    %233 = vmatpush.msra.mxu0 %v44
    %234 = vmatpush.msra.mxu0 %v40
    %235 = vmatmul.f32.gmra.mxu0 0.0
    %v236 = vpop.f32.mrf.mxu0
    %v237 = vadd.f32 0.0, %v236
    %238 = vdwg.mxu0
    %239 = vmatpush.msra.mxu0 %v101
    %240 = vmatpush.msra.mxu0 %v97
    %241 = vmatpush.msra.mxu0 %v93
    %242 = vmatpush.msra.mxu0 %v89
    %243 = vmatpush.msra.mxu0 %v85
    %244 = vmatpush.msra.mxu0 %v81
    %245 = vmatpush.msra.mxu0 %v77
    %246 = vmatpush.msra.mxu0 %v73
    %247 = vmatpush.msra.mxu0 %v69
    %248 = vmatpush.msra.mxu0 %v65
    %249 = vmatpush.msra.mxu0 %v61
    %250 = vmatpush.msra.mxu0 %v57
    %251 = vmatpush.msra.mxu0 %v53
    %252 = vmatpush.msra.mxu0 %v49
    %253 = vmatpush.msra.mxu0 %v45
    %254 = vmatpush.msra.mxu0 %v41
    %255 = vmatmul.f32.gmra.mxu0 0.0
    %v256 = vpop.f32.mrf.mxu0
    %v257 = vadd.f32 0.0, %v256
    %258 = vdwg.mxu0
    %259 = vmatpush.msra.mxu0 %v102
    %260 = vmatpush.msra.mxu0 %v98
    %261 = vmatpush.msra.mxu0 %v94
    %262 = vmatpush.msra.mxu0 %v90
    %263 = vmatpush.msra.mxu0 %v86
    %264 = vmatpush.msra.mxu0 %v82
    %265 = vmatpush.msra.mxu0 %v78
    %266 = vmatpush.msra.mxu0 %v74
    %267 = vmatpush.msra.mxu0 %v70
    %268 = vmatpush.msra.mxu0 %v66
    %269 = vmatpush.msra.mxu0 %v62
    %270 = vmatpush.msra.mxu0 %v58
    %271 = vmatpush.msra.mxu0 %v54
    %272 = vmatpush.msra.mxu0 %v50
    %273 = vmatpush.msra.mxu0 %v46
    %274 = vmatpush.msra.mxu0 %v42
    %275 = vmatmul.f32.gmra.mxu0 0.0
    %v276 = vpop.f32.mrf.mxu0
    %v277 = vadd.f32 0.0, %v276
    %278 = vdwg.mxu0
    %279 = vmatpush.msra.mxu0 %v103
    %280 = vmatpush.msra.mxu0 %v99
    %281 = vmatpush.msra.mxu0 %v95
    %282 = vmatpush.msra.mxu0 %v91
    %283 = vmatpush.msra.mxu0 %v87
    %284 = vmatpush.msra.mxu0 %v83
    %285 = vmatpush.msra.mxu0 %v79
    %286 = vmatpush.msra.mxu0 %v75
    %287 = vmatpush.msra.mxu0 %v71
    %288 = vmatpush.msra.mxu0 %v67
    %289 = vmatpush.msra.mxu0 %v63
    %290 = vmatpush.msra.mxu0 %v59
    %291 = vmatpush.msra.mxu0 %v55
    %292 = vmatpush.msra.mxu0 %v51
    %293 = vmatpush.msra.mxu0 %v47
    %294 = vmatpush.msra.mxu0 %v43
    %295 = vmatmul.f32.gmra.mxu0 0.0
    %v296 = vpop.f32.mrf.mxu0
    %v297 = vadd.f32 0.0, %v296
    %298 = vdwg.mxu0
    %v299 = vadd.f32 %v157, %v237
    %v300 = vadd.f32 %v177, %v257
    %v301 = vadd.f32 %v197, %v277
    %v302 = vadd.f32 %v217, %v297
    %v303 = vxor.u32 %v299, 2147483648
    %v304 = vxor.u32 %v300, 2147483648
    %v305 = vxor.u32 %v301, 2147483648
    %v306 = vmul.f32 %v303, 1.442695
    %v307 = vpow.pop %v306
    %v308 = vmul.f32 %v304, 1.442695
    %v309 = vpow.pop %v308
    %v310 = vmul.f32 %v305, 1.442695
    %v311 = vpow.pop %v310
    %v312 = vadd.f32 %v307, 1.0
    %v313 = vadd.f32 %v309, 1.0
    %v314 = vadd.f32 %v311, 1.0
    %v315 = vrcp.pop %v312
    %v316 = vmul.f32 %v312, %v315
    %v317 = vsub.f32 1.0, %v316
    %v318 = vmul.f32 %v315, %v317
    %v319 = vadd.f32 %v315, %v318
    %vm320 = vweird.f32 %v312
    %vm321 = vweird.f32 %v315
    %vm322 = vmor %vm320, %vm321
    %v323 = vsel %vm322, %v315, %v319
    %v324 = vand.u32 2147483647, %v312
    %vm325 = vcmp.eq.f32.partialorder %v324, 8.507059e+37
    %v326 = vand.u32 %v312, 2147483648
    %v327 = vor.u32 1.1754944e-38, %v326
    %v328 = vsel %vm325, %v327, %v323
    %v329 = vmul.f32 1.0, %v328
    %v330 = vrcp.pop %v313
    %v331 = vmul.f32 %v313, %v330
    %v332 = vsub.f32 1.0, %v331
    %v333 = vmul.f32 %v330, %v332
    %v334 = vadd.f32 %v330, %v333
    %vm335 = vweird.f32 %v313
    %vm336 = vweird.f32 %v330
    %vm337 = vmor %vm335, %vm336
    %v338 = vsel %vm337, %v330, %v334
    %v339 = vand.u32 2147483647, %v313
    %vm340 = vcmp.eq.f32.partialorder %v339, 8.507059e+37
    %v341 = vand.u32 %v313, 2147483648
    %v342 = vor.u32 1.1754944e-38, %v341
    %v343 = vsel %vm340, %v342, %v338
    %v344 = vmul.f32 1.0, %v343
    %v345 = vrcp.pop %v314
    %v346 = vmul.f32 %v314, %v345
    %v347 = vsub.f32 1.0, %v346
    %v348 = vmul.f32 %v345, %v347
    %v349 = vadd.f32 %v345, %v348
    %vm350 = vweird.f32 %v314
    %vm351 = vweird.f32 %v345
    %vm352 = vmor %vm350, %vm351
    %v353 = vsel %vm352, %v345, %v349
    %v354 = vand.u32 2147483647, %v314
    %vm355 = vcmp.eq.f32.partialorder %v354, 8.507059e+37
    %v356 = vand.u32 %v314, 2147483648
    %v357 = vor.u32 1.1754944e-38, %v356
    %v358 = vsel %vm355, %v357, %v353
    %v359 = vmul.f32 1.0, %v358
    %v360 = vtanh.pop %v302
    %v361 = vmul.f32 %v344, 0.0
    %v362 = vmul.f32 %v329, %v360
    %v363 = vadd.f32 %v361, %v362
    %v364 = vtanh.pop %v363
    %v365 = vmul.f32 %v359, %v364
    %366 = vmatpush.msra.mxu0 %v100
    %367 = vmatpush.msra.mxu0 %v96
    %368 = vmatpush.msra.mxu0 %v92
    %369 = vmatpush.msra.mxu0 %v88
    %370 = vmatpush.msra.mxu0 %v84
    %371 = vmatpush.msra.mxu0 %v80
    %372 = vmatpush.msra.mxu0 %v76
    %373 = vmatpush.msra.mxu0 %v72
    %374 = vmatpush.msra.mxu0 %v68
    %375 = vmatpush.msra.mxu0 %v64
    %376 = vmatpush.msra.mxu0 %v60
    %377 = vmatpush.msra.mxu0 %v56
    %378 = vmatpush.msra.mxu0 %v52
    %379 = vmatpush.msra.mxu0 %v48
    %380 = vmatpush.msra.mxu0 %v44
    %381 = vmatpush.msra.mxu0 %v40
    %382 = vmatmul.f32.gmra.mxu0 %v365
    %v383 = vpop.f32.mrf.mxu0
    %v384 = vadd.f32 0.0, %v383
    %385 = vdwg.mxu0
    %386 = vmatpush.msra.mxu0 %v101
    %387 = vmatpush.msra.mxu0 %v97
    %388 = vmatpush.msra.mxu0 %v93
    %389 = vmatpush.msra.mxu0 %v89
    %390 = vmatpush.msra.mxu0 %v85
    %391 = vmatpush.msra.mxu0 %v81
    %392 = vmatpush.msra.mxu0 %v77
    %393 = vmatpush.msra.mxu0 %v73
    %394 = vmatpush.msra.mxu0 %v69
    %395 = vmatpush.msra.mxu0 %v65
    %396 = vmatpush.msra.mxu0 %v61
    %397 = vmatpush.msra.mxu0 %v57
    %398 = vmatpush.msra.mxu0 %v53
    %399 = vmatpush.msra.mxu0 %v49
    %400 = vmatpush.msra.mxu0 %v45
    %401 = vmatpush.msra.mxu0 %v41
    %402 = vmatmul.f32.gmra.mxu0 %v365
    %v403 = vpop.f32.mrf.mxu0
    %v404 = vadd.f32 0.0, %v403
    %405 = vdwg.mxu0
    %406 = vmatpush.msra.mxu0 %v102
    %407 = vmatpush.msra.mxu0 %v98
    %408 = vmatpush.msra.mxu0 %v94
    %409 = vmatpush.msra.mxu0 %v90
    %410 = vmatpush.msra.mxu0 %v86
    %411 = vmatpush.msra.mxu0 %v82
    %412 = vmatpush.msra.mxu0 %v78
    %413 = vmatpush.msra.mxu0 %v74
    %414 = vmatpush.msra.mxu0 %v70
    %415 = vmatpush.msra.mxu0 %v66
    %416 = vmatpush.msra.mxu0 %v62
    %417 = vmatpush.msra.mxu0 %v58
    %418 = vmatpush.msra.mxu0 %v54
    %419 = vmatpush.msra.mxu0 %v50
    %420 = vmatpush.msra.mxu0 %v46
    %421 = vmatpush.msra.mxu0 %v42
    %422 = vmatmul.f32.gmra.mxu0 %v365
    %v423 = vpop.f32.mrf.mxu0
    %v424 = vadd.f32 0.0, %v423
    %425 = vdwg.mxu0
    %426 = vmatpush.msra.mxu0 %v103
    %427 = vmatpush.msra.mxu0 %v99
    %428 = vmatpush.msra.mxu0 %v95
    %429 = vmatpush.msra.mxu0 %v91
    %430 = vmatpush.msra.mxu0 %v87
    %431 = vmatpush.msra.mxu0 %v83
    %432 = vmatpush.msra.mxu0 %v79
    %433 = vmatpush.msra.mxu0 %v75
    %434 = vmatpush.msra.mxu0 %v71
    %435 = vmatpush.msra.mxu0 %v67
    %436 = vmatpush.msra.mxu0 %v63
    %437 = vmatpush.msra.mxu0 %v59
    %438 = vmatpush.msra.mxu0 %v55
    %439 = vmatpush.msra.mxu0 %v51
    %440 = vmatpush.msra.mxu0 %v47
    %441 = vmatpush.msra.mxu0 %v43
    %442 = vmatmul.f32.gmra.mxu0 %v365
    %v443 = vpop.f32.mrf.mxu0
    %v444 = vadd.f32 0.0, %v443
    %445 = vdwg.mxu0
    %v450 = vrot.slane %v384, 7
    %v451 = vrot.slane %v404, 7
    %v452 = vrot.slane %v424, 7
    %v453 = vrot.slane %v444, 7
    %v458 = vadd.f32 %v157, %v450
    %v459 = vadd.f32 %v177, %v451
    %v460 = vadd.f32 %v197, %v452
    %v461 = vadd.f32 %v217, %v453
    %v462 = vxor.u32 %v458, 2147483648
    %v463 = vxor.u32 %v459, 2147483648
    %v464 = vxor.u32 %v460, 2147483648
    %v465 = vmul.f32 %v462, 1.442695
    %v466 = vpow.pop %v465
    %v467 = vmul.f32 %v463, 1.442695
    %v468 = vpow.pop %v467
    %v469 = vmul.f32 %v464, 1.442695
    %v470 = vpow.pop %v469
    %v471 = vadd.f32 %v466, 1.0
    %v472 = vadd.f32 %v468, 1.0
    %v473 = vadd.f32 %v470, 1.0
    %v474 = vrcp.pop %v471
    %v475 = vmul.f32 %v471, %v474
    %v476 = vsub.f32 1.0, %v475
    %v477 = vmul.f32 %v474, %v476
    %v478 = vadd.f32 %v474, %v477
    %vm479 = vweird.f32 %v471
    %vm480 = vweird.f32 %v474
    %vm481 = vmor %vm479, %vm480
    %v482 = vsel %vm481, %v474, %v478
    %v483 = vand.u32 2147483647, %v471
    %vm484 = vcmp.eq.f32.partialorder %v483, 8.507059e+37
    %v485 = vand.u32 %v471, 2147483648
    %v486 = vor.u32 1.1754944e-38, %v485
    %v487 = vsel %vm484, %v486, %v482
    %v488 = vmul.f32 1.0, %v487
    %v489 = vrcp.pop %v472
    %v490 = vmul.f32 %v472, %v489
    %v491 = vsub.f32 1.0, %v490
    %v492 = vmul.f32 %v489, %v491
    %v493 = vadd.f32 %v489, %v492
    %vm494 = vweird.f32 %v472
    %vm495 = vweird.f32 %v489
    %vm496 = vmor %vm494, %vm495
    %v497 = vsel %vm496, %v489, %v493
    %v498 = vand.u32 2147483647, %v472
    %vm499 = vcmp.eq.f32.partialorder %v498, 8.507059e+37
    %v500 = vand.u32 %v472, 2147483648
    %v501 = vor.u32 1.1754944e-38, %v500
    %v502 = vsel %vm499, %v501, %v497
    %v503 = vmul.f32 1.0, %v502
    %v504 = vrcp.pop %v473
    %v505 = vmul.f32 %v473, %v504
    %v506 = vsub.f32 1.0, %v505
    %v507 = vmul.f32 %v504, %v506
    %v508 = vadd.f32 %v504, %v507
    %vm509 = vweird.f32 %v473
    %vm510 = vweird.f32 %v504
    %vm511 = vmor %vm509, %vm510
    %v512 = vsel %vm511, %v504, %v508
    %v513 = vand.u32 2147483647, %v473
    %vm514 = vcmp.eq.f32.partialorder %v513, 8.507059e+37
    %v515 = vand.u32 %v473, 2147483648
    %v516 = vor.u32 1.1754944e-38, %v515
    %v517 = vsel %vm514, %v516, %v512
    %v518 = vmul.f32 1.0, %v517
    %v519 = vtanh.pop %v461
    %v521 = vrot.slane %v363, 7
    %v523 = vmul.f32 %v503, %v521
    %v524 = vmul.f32 %v488, %v519
    %v525 = vadd.f32 %v523, %v524
    %v526 = vtanh.pop %v525
    %v527 = vmul.f32 %v518, %v526
    %v529 = vrot.slane %v527, 1
    %531 = vmatpush.msra.mxu0 %v100
    %532 = vmatpush.msra.mxu0 %v96
    %533 = vmatpush.msra.mxu0 %v92
    %534 = vmatpush.msra.mxu0 %v88
    %535 = vmatpush.msra.mxu0 %v84
    %536 = vmatpush.msra.mxu0 %v80
    %537 = vmatpush.msra.mxu0 %v76
    %538 = vmatpush.msra.mxu0 %v72
    %539 = vmatpush.msra.mxu0 %v68
    %540 = vmatpush.msra.mxu0 %v64
    %541 = vmatpush.msra.mxu0 %v60
    %542 = vmatpush.msra.mxu0 %v56
    %543 = vmatpush.msra.mxu0 %v52
    %544 = vmatpush.msra.mxu0 %v48
    %545 = vmatpush.msra.mxu0 %v44
    %546 = vmatpush.msra.mxu0 %v40
    %547 = vmatmul.f32.gmra.mxu0 %v529
    %v548 = vpop.f32.mrf.mxu0
    %v549 = vadd.f32 0.0, %v548
    %550 = vdwg.mxu0
    %551 = vmatpush.msra.mxu0 %v101
    %552 = vmatpush.msra.mxu0 %v97
    %553 = vmatpush.msra.mxu0 %v93
    %554 = vmatpush.msra.mxu0 %v89
    %555 = vmatpush.msra.mxu0 %v85
    %556 = vmatpush.msra.mxu0 %v81
    %557 = vmatpush.msra.mxu0 %v77
    %558 = vmatpush.msra.mxu0 %v73
    %559 = vmatpush.msra.mxu0 %v69
    %560 = vmatpush.msra.mxu0 %v65
    %561 = vmatpush.msra.mxu0 %v61
    %562 = vmatpush.msra.mxu0 %v57
    %563 = vmatpush.msra.mxu0 %v53
    %564 = vmatpush.msra.mxu0 %v49
    %565 = vmatpush.msra.mxu0 %v45
    %566 = vmatpush.msra.mxu0 %v41
    %567 = vmatmul.f32.gmra.mxu0 %v529
    %v568 = vpop.f32.mrf.mxu0
    %v569 = vadd.f32 0.0, %v568
    %570 = vdwg.mxu0
    %571 = vmatpush.msra.mxu0 %v102
    %572 = vmatpush.msra.mxu0 %v98
    %573 = vmatpush.msra.mxu0 %v94
    %574 = vmatpush.msra.mxu0 %v90
    %575 = vmatpush.msra.mxu0 %v86
    %576 = vmatpush.msra.mxu0 %v82
    %577 = vmatpush.msra.mxu0 %v78
    %578 = vmatpush.msra.mxu0 %v74
    %579 = vmatpush.msra.mxu0 %v70
    %580 = vmatpush.msra.mxu0 %v66
    %581 = vmatpush.msra.mxu0 %v62
    %582 = vmatpush.msra.mxu0 %v58
    %583 = vmatpush.msra.mxu0 %v54
    %584 = vmatpush.msra.mxu0 %v50
    %585 = vmatpush.msra.mxu0 %v46
    %586 = vmatpush.msra.mxu0 %v42
    %587 = vmatmul.f32.gmra.mxu0 %v529
    %v588 = vpop.f32.mrf.mxu0
    %v589 = vadd.f32 0.0, %v588
    %590 = vdwg.mxu0
    %591 = vmatpush.msra.mxu0 %v103
    %592 = vmatpush.msra.mxu0 %v99
    %593 = vmatpush.msra.mxu0 %v95
    %594 = vmatpush.msra.mxu0 %v91
    %595 = vmatpush.msra.mxu0 %v87
    %596 = vmatpush.msra.mxu0 %v83
    %597 = vmatpush.msra.mxu0 %v79
    %598 = vmatpush.msra.mxu0 %v75
    %599 = vmatpush.msra.mxu0 %v71
    %600 = vmatpush.msra.mxu0 %v67
    %601 = vmatpush.msra.mxu0 %v63
    %602 = vmatpush.msra.mxu0 %v59
    %603 = vmatpush.msra.mxu0 %v55
    %604 = vmatpush.msra.mxu0 %v51
    %605 = vmatpush.msra.mxu0 %v47
    %606 = vmatpush.msra.mxu0 %v43
    %607 = vmatmul.f32.gmra.mxu0 %v529
    %v608 = vpop.f32.mrf.mxu0
    %v609 = vadd.f32 0.0, %v608
    %610 = vdwg.mxu0
    %v615 = vrot.slane %v549, 6
    %v616 = vrot.slane %v569, 6
    %v617 = vrot.slane %v589, 6
    %v618 = vrot.slane %v609, 6
    %v623 = vadd.f32 %v157, %v615
    %v624 = vadd.f32 %v177, %v616
    %v625 = vadd.f32 %v197, %v617
    %v626 = vadd.f32 %v217, %v618
    %v627 = vxor.u32 %v623, 2147483648
    %v628 = vxor.u32 %v624, 2147483648
    %v629 = vxor.u32 %v625, 2147483648
    %v630 = vmul.f32 %v627, 1.442695
    %v631 = vpow.pop %v630
    %v632 = vmul.f32 %v628, 1.442695
    %v633 = vpow.pop %v632
    %v634 = vmul.f32 %v629, 1.442695
    %v635 = vpow.pop %v634
    %v636 = vadd.f32 %v631, 1.0
    %v637 = vadd.f32 %v633, 1.0
    %v638 = vadd.f32 %v635, 1.0
    %v639 = vrcp.pop %v636
    %v640 = vmul.f32 %v636, %v639
    %v641 = vsub.f32 1.0, %v640
    %v642 = vmul.f32 %v639, %v641
    %v643 = vadd.f32 %v639, %v642
    %vm644 = vweird.f32 %v636
    %vm645 = vweird.f32 %v639
    %vm646 = vmor %vm644, %vm645
    %v647 = vsel %vm646, %v639, %v643
    %v648 = vand.u32 2147483647, %v636
    %vm649 = vcmp.eq.f32.partialorder %v648, 8.507059e+37
    %v650 = vand.u32 %v636, 2147483648
    %v651 = vor.u32 1.1754944e-38, %v650
    %v652 = vsel %vm649, %v651, %v647
    %v653 = vmul.f32 1.0, %v652
    %v654 = vrcp.pop %v637
    %v655 = vmul.f32 %v637, %v654
    %v656 = vsub.f32 1.0, %v655
    %v657 = vmul.f32 %v654, %v656
    %v658 = vadd.f32 %v654, %v657
    %vm659 = vweird.f32 %v637
    %vm660 = vweird.f32 %v654
    %vm661 = vmor %vm659, %vm660
    %v662 = vsel %vm661, %v654, %v658
    %v663 = vand.u32 2147483647, %v637
    %vm664 = vcmp.eq.f32.partialorder %v663, 8.507059e+37
    %v665 = vand.u32 %v637, 2147483648
    %v666 = vor.u32 1.1754944e-38, %v665
    %v667 = vsel %vm664, %v666, %v662
    %v668 = vmul.f32 1.0, %v667
    %v669 = vrcp.pop %v638
    %v670 = vmul.f32 %v638, %v669
    %v671 = vsub.f32 1.0, %v670
    %v672 = vmul.f32 %v669, %v671
    %v673 = vadd.f32 %v669, %v672
    %vm674 = vweird.f32 %v638
    %vm675 = vweird.f32 %v669
    %vm676 = vmor %vm674, %vm675
    %v677 = vsel %vm676, %v669, %v673
    %v678 = vand.u32 2147483647, %v638
    %vm679 = vcmp.eq.f32.partialorder %v678, 8.507059e+37
    %v680 = vand.u32 %v638, 2147483648
    %v681 = vor.u32 1.1754944e-38, %v680
    %v682 = vsel %vm679, %v681, %v677
    %v683 = vmul.f32 1.0, %v682
    %v684 = vtanh.pop %v626
    %v686 = vrot.slane %v525, 7
    %v688 = vmul.f32 %v668, %v686
    %v689 = vmul.f32 %v653, %v684
    %v690 = vadd.f32 %v688, %v689
    %v691 = vtanh.pop %v690
    %v692 = vmul.f32 %v683, %v691
    %v694 = vrot.slane %v692, 2
    %696 = vmatpush.msra.mxu0 %v100
    %697 = vmatpush.msra.mxu0 %v96
    %698 = vmatpush.msra.mxu0 %v92
    %699 = vmatpush.msra.mxu0 %v88
    %700 = vmatpush.msra.mxu0 %v84
    %701 = vmatpush.msra.mxu0 %v80
    %702 = vmatpush.msra.mxu0 %v76
    %703 = vmatpush.msra.mxu0 %v72
    %704 = vmatpush.msra.mxu0 %v68
    %705 = vmatpush.msra.mxu0 %v64
    %706 = vmatpush.msra.mxu0 %v60
    %707 = vmatpush.msra.mxu0 %v56
    %708 = vmatpush.msra.mxu0 %v52
    %709 = vmatpush.msra.mxu0 %v48
    %710 = vmatpush.msra.mxu0 %v44
    %711 = vmatpush.msra.mxu0 %v40
    %712 = vmatmul.f32.gmra.mxu0 %v694
    %v713 = vpop.f32.mrf.mxu0
    %v714 = vadd.f32 0.0, %v713
    %715 = vdwg.mxu0
    %716 = vmatpush.msra.mxu0 %v101
    %717 = vmatpush.msra.mxu0 %v97
    %718 = vmatpush.msra.mxu0 %v93
    %719 = vmatpush.msra.mxu0 %v89
    %720 = vmatpush.msra.mxu0 %v85
    %721 = vmatpush.msra.mxu0 %v81
    %722 = vmatpush.msra.mxu0 %v77
    %723 = vmatpush.msra.mxu0 %v73
    %724 = vmatpush.msra.mxu0 %v69
    %725 = vmatpush.msra.mxu0 %v65
    %726 = vmatpush.msra.mxu0 %v61
    %727 = vmatpush.msra.mxu0 %v57
    %728 = vmatpush.msra.mxu0 %v53
    %729 = vmatpush.msra.mxu0 %v49
    %730 = vmatpush.msra.mxu0 %v45
    %731 = vmatpush.msra.mxu0 %v41
    %732 = vmatmul.f32.gmra.mxu0 %v694
    %v733 = vpop.f32.mrf.mxu0
    %v734 = vadd.f32 0.0, %v733
    %735 = vdwg.mxu0
    %736 = vmatpush.msra.mxu0 %v102
    %737 = vmatpush.msra.mxu0 %v98
    %738 = vmatpush.msra.mxu0 %v94
    %739 = vmatpush.msra.mxu0 %v90
    %740 = vmatpush.msra.mxu0 %v86
    %741 = vmatpush.msra.mxu0 %v82
    %742 = vmatpush.msra.mxu0 %v78
    %743 = vmatpush.msra.mxu0 %v74
    %744 = vmatpush.msra.mxu0 %v70
    %745 = vmatpush.msra.mxu0 %v66
    %746 = vmatpush.msra.mxu0 %v62
    %747 = vmatpush.msra.mxu0 %v58
    %748 = vmatpush.msra.mxu0 %v54
    %749 = vmatpush.msra.mxu0 %v50
    %750 = vmatpush.msra.mxu0 %v46
    %751 = vmatpush.msra.mxu0 %v42
    %752 = vmatmul.f32.gmra.mxu0 %v694
    %v753 = vpop.f32.mrf.mxu0
    %v754 = vadd.f32 0.0, %v753
    %755 = vdwg.mxu0
    %756 = vmatpush.msra.mxu0 %v103
    %757 = vmatpush.msra.mxu0 %v99
    %758 = vmatpush.msra.mxu0 %v95
    %759 = vmatpush.msra.mxu0 %v91
    %760 = vmatpush.msra.mxu0 %v87
    %761 = vmatpush.msra.mxu0 %v83
    %762 = vmatpush.msra.mxu0 %v79
    %763 = vmatpush.msra.mxu0 %v75
    %764 = vmatpush.msra.mxu0 %v71
    %765 = vmatpush.msra.mxu0 %v67
    %766 = vmatpush.msra.mxu0 %v63
    %767 = vmatpush.msra.mxu0 %v59
    %768 = vmatpush.msra.mxu0 %v55
    %769 = vmatpush.msra.mxu0 %v51
    %770 = vmatpush.msra.mxu0 %v47
    %771 = vmatpush.msra.mxu0 %v43
    %772 = vmatmul.f32.gmra.mxu0 %v694
    %v773 = vpop.f32.mrf.mxu0
    %v774 = vadd.f32 0.0, %v773
    %775 = vdwg.mxu0
    %v780 = vrot.slane %v714, 5
    %v781 = vrot.slane %v734, 5
    %v782 = vrot.slane %v754, 5
    %v783 = vrot.slane %v774, 5
    %v788 = vadd.f32 %v157, %v780
    %v789 = vadd.f32 %v177, %v781
    %v790 = vadd.f32 %v197, %v782
    %v791 = vadd.f32 %v217, %v783
    %v792 = vxor.u32 %v788, 2147483648
    %v793 = vxor.u32 %v789, 2147483648
    %v794 = vxor.u32 %v790, 2147483648
    %v795 = vmul.f32 %v792, 1.442695
    %v796 = vpow.pop %v795
    %v797 = vmul.f32 %v793, 1.442695
    %v798 = vpow.pop %v797
    %v799 = vmul.f32 %v794, 1.442695
    %v800 = vpow.pop %v799
    %v801 = vadd.f32 %v796, 1.0
    %v802 = vadd.f32 %v798, 1.0
    %v803 = vadd.f32 %v800, 1.0
    %v804 = vrcp.pop %v801
    %v805 = vmul.f32 %v801, %v804
    %v806 = vsub.f32 1.0, %v805
    %v807 = vmul.f32 %v804, %v806
    %v808 = vadd.f32 %v804, %v807
    %vm809 = vweird.f32 %v801
    %vm810 = vweird.f32 %v804
    %vm811 = vmor %vm809, %vm810
    %v812 = vsel %vm811, %v804, %v808
    %v813 = vand.u32 2147483647, %v801
    %vm814 = vcmp.eq.f32.partialorder %v813, 8.507059e+37
    %v815 = vand.u32 %v801, 2147483648
    %v816 = vor.u32 1.1754944e-38, %v815
    %v817 = vsel %vm814, %v816, %v812
    %v818 = vmul.f32 1.0, %v817
    %v819 = vrcp.pop %v802
    %v820 = vmul.f32 %v802, %v819
    %v821 = vsub.f32 1.0, %v820
    %v822 = vmul.f32 %v819, %v821
    %v823 = vadd.f32 %v819, %v822
    %vm824 = vweird.f32 %v802
    %vm825 = vweird.f32 %v819
    %vm826 = vmor %vm824, %vm825
    %v827 = vsel %vm826, %v819, %v823
    %v828 = vand.u32 2147483647, %v802
    %vm829 = vcmp.eq.f32.partialorder %v828, 8.507059e+37
    %v830 = vand.u32 %v802, 2147483648
    %v831 = vor.u32 1.1754944e-38, %v830
    %v832 = vsel %vm829, %v831, %v827
    %v833 = vmul.f32 1.0, %v832
    %v834 = vrcp.pop %v803
    %v835 = vmul.f32 %v803, %v834
    %v836 = vsub.f32 1.0, %v835
    %v837 = vmul.f32 %v834, %v836
    %v838 = vadd.f32 %v834, %v837
    %vm839 = vweird.f32 %v803
    %vm840 = vweird.f32 %v834
    %vm841 = vmor %vm839, %vm840
    %v842 = vsel %vm841, %v834, %v838
    %v843 = vand.u32 2147483647, %v803
    %vm844 = vcmp.eq.f32.partialorder %v843, 8.507059e+37
    %v845 = vand.u32 %v803, 2147483648
    %v846 = vor.u32 1.1754944e-38, %v845
    %v847 = vsel %vm844, %v846, %v842
    %v848 = vmul.f32 1.0, %v847
    %v849 = vtanh.pop %v791
    %v851 = vrot.slane %v690, 7
    %v853 = vmul.f32 %v833, %v851
    %v854 = vmul.f32 %v818, %v849
    %v855 = vadd.f32 %v853, %v854
    %v856 = vtanh.pop %v855
    %v857 = vmul.f32 %v848, %v856
    %v859 = vrot.slane %v857, 3
    %861 = vmatpush.msra.mxu0 %v100
    %862 = vmatpush.msra.mxu0 %v96
    %863 = vmatpush.msra.mxu0 %v92
    %864 = vmatpush.msra.mxu0 %v88
    %865 = vmatpush.msra.mxu0 %v84
    %866 = vmatpush.msra.mxu0 %v80
    %867 = vmatpush.msra.mxu0 %v76
    %868 = vmatpush.msra.mxu0 %v72
    %869 = vmatpush.msra.mxu0 %v68
    %870 = vmatpush.msra.mxu0 %v64
    %871 = vmatpush.msra.mxu0 %v60
    %872 = vmatpush.msra.mxu0 %v56
    %873 = vmatpush.msra.mxu0 %v52
    %874 = vmatpush.msra.mxu0 %v48
    %875 = vmatpush.msra.mxu0 %v44
    %876 = vmatpush.msra.mxu0 %v40
    %877 = vmatmul.f32.gmra.mxu0 %v859
    %v878 = vpop.f32.mrf.mxu0
    %v879 = vadd.f32 0.0, %v878
    %880 = vdwg.mxu0
    %881 = vmatpush.msra.mxu0 %v101
    %882 = vmatpush.msra.mxu0 %v97
    %883 = vmatpush.msra.mxu0 %v93
    %884 = vmatpush.msra.mxu0 %v89
    %885 = vmatpush.msra.mxu0 %v85
    %886 = vmatpush.msra.mxu0 %v81
    %887 = vmatpush.msra.mxu0 %v77
    %888 = vmatpush.msra.mxu0 %v73
    %889 = vmatpush.msra.mxu0 %v69
    %890 = vmatpush.msra.mxu0 %v65
    %891 = vmatpush.msra.mxu0 %v61
    %892 = vmatpush.msra.mxu0 %v57
    %893 = vmatpush.msra.mxu0 %v53
    %894 = vmatpush.msra.mxu0 %v49
    %895 = vmatpush.msra.mxu0 %v45
    %896 = vmatpush.msra.mxu0 %v41
    %897 = vmatmul.f32.gmra.mxu0 %v859
    %v898 = vpop.f32.mrf.mxu0
    %v899 = vadd.f32 0.0, %v898
    %900 = vdwg.mxu0
    %901 = vmatpush.msra.mxu0 %v102
    %902 = vmatpush.msra.mxu0 %v98
    %903 = vmatpush.msra.mxu0 %v94
    %904 = vmatpush.msra.mxu0 %v90
    %905 = vmatpush.msra.mxu0 %v86
    %906 = vmatpush.msra.mxu0 %v82
    %907 = vmatpush.msra.mxu0 %v78
    %908 = vmatpush.msra.mxu0 %v74
    %909 = vmatpush.msra.mxu0 %v70
    %910 = vmatpush.msra.mxu0 %v66
    %911 = vmatpush.msra.mxu0 %v62
    %912 = vmatpush.msra.mxu0 %v58
    %913 = vmatpush.msra.mxu0 %v54
    %914 = vmatpush.msra.mxu0 %v50
    %915 = vmatpush.msra.mxu0 %v46
    %916 = vmatpush.msra.mxu0 %v42
    %917 = vmatmul.f32.gmra.mxu0 %v859
    %v918 = vpop.f32.mrf.mxu0
    %v919 = vadd.f32 0.0, %v918
    %920 = vdwg.mxu0
    %921 = vmatpush.msra.mxu0 %v103
    %922 = vmatpush.msra.mxu0 %v99
    %923 = vmatpush.msra.mxu0 %v95
    %924 = vmatpush.msra.mxu0 %v91
    %925 = vmatpush.msra.mxu0 %v87
    %926 = vmatpush.msra.mxu0 %v83
    %927 = vmatpush.msra.mxu0 %v79
    %928 = vmatpush.msra.mxu0 %v75
    %929 = vmatpush.msra.mxu0 %v71
    %930 = vmatpush.msra.mxu0 %v67
    %931 = vmatpush.msra.mxu0 %v63
    %932 = vmatpush.msra.mxu0 %v59
    %933 = vmatpush.msra.mxu0 %v55
    %934 = vmatpush.msra.mxu0 %v51
    %935 = vmatpush.msra.mxu0 %v47
    %936 = vmatpush.msra.mxu0 %v43
    %937 = vmatmul.f32.gmra.mxu0 %v859
    %v938 = vpop.f32.mrf.mxu0
    %v939 = vadd.f32 0.0, %v938
    %940 = vdwg.mxu0
    %v945 = vrot.slane %v879, 4
    %v946 = vrot.slane %v899, 4
    %v947 = vrot.slane %v919, 4
    %v948 = vrot.slane %v939, 4
    %v953 = vadd.f32 %v157, %v945
    %v954 = vadd.f32 %v177, %v946
    %v955 = vadd.f32 %v197, %v947
    %v956 = vadd.f32 %v217, %v948
    %v957 = vxor.u32 %v953, 2147483648
    %v958 = vxor.u32 %v954, 2147483648
    %v959 = vxor.u32 %v955, 2147483648
    %v960 = vmul.f32 %v957, 1.442695
    %v961 = vpow.pop %v960
    %v962 = vmul.f32 %v958, 1.442695
    %v963 = vpow.pop %v962
    %v964 = vmul.f32 %v959, 1.442695
    %v965 = vpow.pop %v964
    %v966 = vadd.f32 %v961, 1.0
    %v967 = vadd.f32 %v963, 1.0
    %v968 = vadd.f32 %v965, 1.0
    %v969 = vrcp.pop %v966
    %v970 = vmul.f32 %v966, %v969
    %v971 = vsub.f32 1.0, %v970
    %v972 = vmul.f32 %v969, %v971
    %v973 = vadd.f32 %v969, %v972
    %vm974 = vweird.f32 %v966
    %vm975 = vweird.f32 %v969
    %vm976 = vmor %vm974, %vm975
    %v977 = vsel %vm976, %v969, %v973
    %v978 = vand.u32 2147483647, %v966
    %vm979 = vcmp.eq.f32.partialorder %v978, 8.507059e+37
    %v980 = vand.u32 %v966, 2147483648
    %v981 = vor.u32 1.1754944e-38, %v980
    %v982 = vsel %vm979, %v981, %v977
    %v983 = vmul.f32 1.0, %v982
    %v984 = vrcp.pop %v967
    %v985 = vmul.f32 %v967, %v984
    %v986 = vsub.f32 1.0, %v985
    %v987 = vmul.f32 %v984, %v986
    %v988 = vadd.f32 %v984, %v987
    %vm989 = vweird.f32 %v967
    %vm990 = vweird.f32 %v984
    %vm991 = vmor %vm989, %vm990
    %v992 = vsel %vm991, %v984, %v988
    %v993 = vand.u32 2147483647, %v967
    %vm994 = vcmp.eq.f32.partialorder %v993, 8.507059e+37
    %v995 = vand.u32 %v967, 2147483648
    %v996 = vor.u32 1.1754944e-38, %v995
    %v997 = vsel %vm994, %v996, %v992
    %v998 = vmul.f32 1.0, %v997
    %v999 = vrcp.pop %v968
    %v1000 = vmul.f32 %v968, %v999
    %v1001 = vsub.f32 1.0, %v1000
    %v1002 = vmul.f32 %v999, %v1001
    %v1003 = vadd.f32 %v999, %v1002
    %vm1004 = vweird.f32 %v968
    %vm1005 = vweird.f32 %v999
    %vm1006 = vmor %vm1004, %vm1005
    %v1007 = vsel %vm1006, %v999, %v1003
    %v1008 = vand.u32 2147483647, %v968
    %vm1009 = vcmp.eq.f32.partialorder %v1008, 8.507059e+37
    %v1010 = vand.u32 %v968, 2147483648
    %v1011 = vor.u32 1.1754944e-38, %v1010
    %v1012 = vsel %vm1009, %v1011, %v1007
    %v1013 = vmul.f32 1.0, %v1012
    %v1014 = vtanh.pop %v956
    %v1016 = vrot.slane %v855, 7
    %v1018 = vmul.f32 %v998, %v1016
    %v1019 = vmul.f32 %v983, %v1014
    %v1020 = vadd.f32 %v1018, %v1019
    %v1021 = vtanh.pop %v1020
    %v1022 = vmul.f32 %v1013, %v1021
    %v1024 = vrot.slane %v1022, 4
    %1026 = vmatpush.msra.mxu0 %v100
    %1027 = vmatpush.msra.mxu0 %v96
    %1028 = vmatpush.msra.mxu0 %v92
    %1029 = vmatpush.msra.mxu0 %v88
    %1030 = vmatpush.msra.mxu0 %v84
    %1031 = vmatpush.msra.mxu0 %v80
    %1032 = vmatpush.msra.mxu0 %v76
    %1033 = vmatpush.msra.mxu0 %v72
    %1034 = vmatpush.msra.mxu0 %v68
    %1035 = vmatpush.msra.mxu0 %v64
    %1036 = vmatpush.msra.mxu0 %v60
    %1037 = vmatpush.msra.mxu0 %v56
    %1038 = vmatpush.msra.mxu0 %v52
    %1039 = vmatpush.msra.mxu0 %v48
    %1040 = vmatpush.msra.mxu0 %v44
    %1041 = vmatpush.msra.mxu0 %v40
    %1042 = vmatmul.f32.gmra.mxu0 %v1024
    %v1043 = vpop.f32.mrf.mxu0
    %v1044 = vadd.f32 0.0, %v1043
    %1045 = vdwg.mxu0
    %1046 = vmatpush.msra.mxu0 %v101
    %1047 = vmatpush.msra.mxu0 %v97
    %1048 = vmatpush.msra.mxu0 %v93
    %1049 = vmatpush.msra.mxu0 %v89
    %1050 = vmatpush.msra.mxu0 %v85
    %1051 = vmatpush.msra.mxu0 %v81
    %1052 = vmatpush.msra.mxu0 %v77
    %1053 = vmatpush.msra.mxu0 %v73
    %1054 = vmatpush.msra.mxu0 %v69
    %1055 = vmatpush.msra.mxu0 %v65
    %1056 = vmatpush.msra.mxu0 %v61
    %1057 = vmatpush.msra.mxu0 %v57
    %1058 = vmatpush.msra.mxu0 %v53
    %1059 = vmatpush.msra.mxu0 %v49
    %1060 = vmatpush.msra.mxu0 %v45
    %1061 = vmatpush.msra.mxu0 %v41
    %1062 = vmatmul.f32.gmra.mxu0 %v1024
    %v1063 = vpop.f32.mrf.mxu0
    %v1064 = vadd.f32 0.0, %v1063
    %1065 = vdwg.mxu0
    %1066 = vmatpush.msra.mxu0 %v102
    %1067 = vmatpush.msra.mxu0 %v98
    %1068 = vmatpush.msra.mxu0 %v94
    %1069 = vmatpush.msra.mxu0 %v90
    %1070 = vmatpush.msra.mxu0 %v86
    %1071 = vmatpush.msra.mxu0 %v82
    %1072 = vmatpush.msra.mxu0 %v78
    %1073 = vmatpush.msra.mxu0 %v74
    %1074 = vmatpush.msra.mxu0 %v70
    %1075 = vmatpush.msra.mxu0 %v66
    %1076 = vmatpush.msra.mxu0 %v62
    %1077 = vmatpush.msra.mxu0 %v58
    %1078 = vmatpush.msra.mxu0 %v54
    %1079 = vmatpush.msra.mxu0 %v50
    %1080 = vmatpush.msra.mxu0 %v46
    %1081 = vmatpush.msra.mxu0 %v42
    %1082 = vmatmul.f32.gmra.mxu0 %v1024
    %v1083 = vpop.f32.mrf.mxu0
    %v1084 = vadd.f32 0.0, %v1083
    %1085 = vdwg.mxu0
    %1086 = vmatpush.msra.mxu0 %v103
    %1087 = vmatpush.msra.mxu0 %v99
    %1088 = vmatpush.msra.mxu0 %v95
    %1089 = vmatpush.msra.mxu0 %v91
    %1090 = vmatpush.msra.mxu0 %v87
    %1091 = vmatpush.msra.mxu0 %v83
    %1092 = vmatpush.msra.mxu0 %v79
    %1093 = vmatpush.msra.mxu0 %v75
    %1094 = vmatpush.msra.mxu0 %v71
    %1095 = vmatpush.msra.mxu0 %v67
    %1096 = vmatpush.msra.mxu0 %v63
    %1097 = vmatpush.msra.mxu0 %v59
    %1098 = vmatpush.msra.mxu0 %v55
    %1099 = vmatpush.msra.mxu0 %v51
    %1100 = vmatpush.msra.mxu0 %v47
    %1101 = vmatpush.msra.mxu0 %v43
    %1102 = vmatmul.f32.gmra.mxu0 %v1024
    %v1103 = vpop.f32.mrf.mxu0
    %v1104 = vadd.f32 0.0, %v1103
    %1105 = vdwg.mxu0
    %v1110 = vrot.slane %v1044, 3
    %v1111 = vrot.slane %v1064, 3
    %v1112 = vrot.slane %v1084, 3
    %v1113 = vrot.slane %v1104, 3
    %v1118 = vadd.f32 %v157, %v1110
    %v1119 = vadd.f32 %v177, %v1111
    %v1120 = vadd.f32 %v197, %v1112
    %v1121 = vadd.f32 %v217, %v1113
    %v1122 = vxor.u32 %v1118, 2147483648
    %v1123 = vxor.u32 %v1119, 2147483648
    %v1124 = vxor.u32 %v1120, 2147483648
    %v1125 = vmul.f32 %v1122, 1.442695
    %v1126 = vpow.pop %v1125
    %v1127 = vmul.f32 %v1123, 1.442695
    %v1128 = vpow.pop %v1127
    %v1129 = vmul.f32 %v1124, 1.442695
    %v1130 = vpow.pop %v1129
    %v1131 = vadd.f32 %v1126, 1.0
    %v1132 = vadd.f32 %v1128, 1.0
    %v1133 = vadd.f32 %v1130, 1.0
    %v1134 = vrcp.pop %v1131
    %v1135 = vmul.f32 %v1131, %v1134
    %v1136 = vsub.f32 1.0, %v1135
    %v1137 = vmul.f32 %v1134, %v1136
    %v1138 = vadd.f32 %v1134, %v1137
    %vm1139 = vweird.f32 %v1131
    %vm1140 = vweird.f32 %v1134
    %vm1141 = vmor %vm1139, %vm1140
    %v1142 = vsel %vm1141, %v1134, %v1138
    %v1143 = vand.u32 2147483647, %v1131
    %vm1144 = vcmp.eq.f32.partialorder %v1143, 8.507059e+37
    %v1145 = vand.u32 %v1131, 2147483648
    %v1146 = vor.u32 1.1754944e-38, %v1145
    %v1147 = vsel %vm1144, %v1146, %v1142
    %v1148 = vmul.f32 1.0, %v1147
    %v1149 = vrcp.pop %v1132
    %v1150 = vmul.f32 %v1132, %v1149
    %v1151 = vsub.f32 1.0, %v1150
    %v1152 = vmul.f32 %v1149, %v1151
    %v1153 = vadd.f32 %v1149, %v1152
    %vm1154 = vweird.f32 %v1132
    %vm1155 = vweird.f32 %v1149
    %vm1156 = vmor %vm1154, %vm1155
    %v1157 = vsel %vm1156, %v1149, %v1153
    %v1158 = vand.u32 2147483647, %v1132
    %vm1159 = vcmp.eq.f32.partialorder %v1158, 8.507059e+37
    %v1160 = vand.u32 %v1132, 2147483648
    %v1161 = vor.u32 1.1754944e-38, %v1160
    %v1162 = vsel %vm1159, %v1161, %v1157
    %v1163 = vmul.f32 1.0, %v1162
    %v1164 = vrcp.pop %v1133
    %v1165 = vmul.f32 %v1133, %v1164
    %v1166 = vsub.f32 1.0, %v1165
    %v1167 = vmul.f32 %v1164, %v1166
    %v1168 = vadd.f32 %v1164, %v1167
    %vm1169 = vweird.f32 %v1133
    %vm1170 = vweird.f32 %v1164
    %vm1171 = vmor %vm1169, %vm1170
    %v1172 = vsel %vm1171, %v1164, %v1168
    %v1173 = vand.u32 2147483647, %v1133
    %vm1174 = vcmp.eq.f32.partialorder %v1173, 8.507059e+37
    %v1175 = vand.u32 %v1133, 2147483648
    %v1176 = vor.u32 1.1754944e-38, %v1175
    %v1177 = vsel %vm1174, %v1176, %v1172
    %v1178 = vmul.f32 1.0, %v1177
    %v1179 = vtanh.pop %v1121
    %v1181 = vrot.slane %v1020, 7
    %v1183 = vmul.f32 %v1163, %v1181
    %v1184 = vmul.f32 %v1148, %v1179
    %v1185 = vadd.f32 %v1183, %v1184
    %v1186 = vtanh.pop %v1185
    %v1187 = vmul.f32 %v1178, %v1186
    %v1189 = vrot.slane %v1187, 5
    %1191 = vmatpush.msra.mxu0 %v100
    %1192 = vmatpush.msra.mxu0 %v96
    %1193 = vmatpush.msra.mxu0 %v92
    %1194 = vmatpush.msra.mxu0 %v88
    %1195 = vmatpush.msra.mxu0 %v84
    %1196 = vmatpush.msra.mxu0 %v80
    %1197 = vmatpush.msra.mxu0 %v76
    %1198 = vmatpush.msra.mxu0 %v72
    %1199 = vmatpush.msra.mxu0 %v68
    %1200 = vmatpush.msra.mxu0 %v64
    %1201 = vmatpush.msra.mxu0 %v60
    %1202 = vmatpush.msra.mxu0 %v56
    %1203 = vmatpush.msra.mxu0 %v52
    %1204 = vmatpush.msra.mxu0 %v48
    %1205 = vmatpush.msra.mxu0 %v44
    %1206 = vmatpush.msra.mxu0 %v40
    %1207 = vmatmul.f32.gmra.mxu0 %v1189
    %v1208 = vpop.f32.mrf.mxu0
    %v1209 = vadd.f32 0.0, %v1208
    %1210 = vdwg.mxu0
    %1211 = vmatpush.msra.mxu0 %v101
    %1212 = vmatpush.msra.mxu0 %v97
    %1213 = vmatpush.msra.mxu0 %v93
    %1214 = vmatpush.msra.mxu0 %v89
    %1215 = vmatpush.msra.mxu0 %v85
    %1216 = vmatpush.msra.mxu0 %v81
    %1217 = vmatpush.msra.mxu0 %v77
    %1218 = vmatpush.msra.mxu0 %v73
    %1219 = vmatpush.msra.mxu0 %v69
    %1220 = vmatpush.msra.mxu0 %v65
    %1221 = vmatpush.msra.mxu0 %v61
    %1222 = vmatpush.msra.mxu0 %v57
    %1223 = vmatpush.msra.mxu0 %v53
    %1224 = vmatpush.msra.mxu0 %v49
    %1225 = vmatpush.msra.mxu0 %v45
    %1226 = vmatpush.msra.mxu0 %v41
    %1227 = vmatmul.f32.gmra.mxu0 %v1189
    %v1228 = vpop.f32.mrf.mxu0
    %v1229 = vadd.f32 0.0, %v1228
    %1230 = vdwg.mxu0
    %1231 = vmatpush.msra.mxu0 %v102
    %1232 = vmatpush.msra.mxu0 %v98
    %1233 = vmatpush.msra.mxu0 %v94
    %1234 = vmatpush.msra.mxu0 %v90
    %1235 = vmatpush.msra.mxu0 %v86
    %1236 = vmatpush.msra.mxu0 %v82
    %1237 = vmatpush.msra.mxu0 %v78
    %1238 = vmatpush.msra.mxu0 %v74
    %1239 = vmatpush.msra.mxu0 %v70
    %1240 = vmatpush.msra.mxu0 %v66
    %1241 = vmatpush.msra.mxu0 %v62
    %1242 = vmatpush.msra.mxu0 %v58
    %1243 = vmatpush.msra.mxu0 %v54
    %1244 = vmatpush.msra.mxu0 %v50
    %1245 = vmatpush.msra.mxu0 %v46
    %1246 = vmatpush.msra.mxu0 %v42
    %1247 = vmatmul.f32.gmra.mxu0 %v1189
    %v1248 = vpop.f32.mrf.mxu0
    %v1249 = vadd.f32 0.0, %v1248
    %1250 = vdwg.mxu0
    %1251 = vmatpush.msra.mxu0 %v103
    %1252 = vmatpush.msra.mxu0 %v99
    %1253 = vmatpush.msra.mxu0 %v95
    %1254 = vmatpush.msra.mxu0 %v91
    %1255 = vmatpush.msra.mxu0 %v87
    %1256 = vmatpush.msra.mxu0 %v83
    %1257 = vmatpush.msra.mxu0 %v79
    %1258 = vmatpush.msra.mxu0 %v75
    %1259 = vmatpush.msra.mxu0 %v71
    %1260 = vmatpush.msra.mxu0 %v67
    %1261 = vmatpush.msra.mxu0 %v63
    %1262 = vmatpush.msra.mxu0 %v59
    %1263 = vmatpush.msra.mxu0 %v55
    %1264 = vmatpush.msra.mxu0 %v51
    %1265 = vmatpush.msra.mxu0 %v47
    %1266 = vmatpush.msra.mxu0 %v43
    %1267 = vmatmul.f32.gmra.mxu0 %v1189
    %v1268 = vpop.f32.mrf.mxu0
    %v1269 = vadd.f32 0.0, %v1268
    %1270 = vdwg.mxu0
    %v1275 = vrot.slane %v1209, 2
    %v1276 = vrot.slane %v1229, 2
    %v1277 = vrot.slane %v1249, 2
    %v1278 = vrot.slane %v1269, 2
    %v1283 = vadd.f32 %v157, %v1275
    %v1284 = vadd.f32 %v177, %v1276
    %v1285 = vadd.f32 %v197, %v1277
    %v1286 = vadd.f32 %v217, %v1278
    %v1287 = vxor.u32 %v1283, 2147483648
    %v1288 = vxor.u32 %v1284, 2147483648
    %v1289 = vxor.u32 %v1285, 2147483648
    %v1290 = vmul.f32 %v1287, 1.442695
    %v1291 = vpow.pop %v1290
    %v1292 = vmul.f32 %v1288, 1.442695
    %v1293 = vpow.pop %v1292
    %v1294 = vmul.f32 %v1289, 1.442695
    %v1295 = vpow.pop %v1294
    %v1296 = vadd.f32 %v1291, 1.0
    %v1297 = vadd.f32 %v1293, 1.0
    %v1298 = vadd.f32 %v1295, 1.0
    %v1299 = vrcp.pop %v1296
    %v1300 = vmul.f32 %v1296, %v1299
    %v1301 = vsub.f32 1.0, %v1300
    %v1302 = vmul.f32 %v1299, %v1301
    %v1303 = vadd.f32 %v1299, %v1302
    %vm1304 = vweird.f32 %v1296
    %vm1305 = vweird.f32 %v1299
    %vm1306 = vmor %vm1304, %vm1305
    %v1307 = vsel %vm1306, %v1299, %v1303
    %v1308 = vand.u32 2147483647, %v1296
    %vm1309 = vcmp.eq.f32.partialorder %v1308, 8.507059e+37
    %v1310 = vand.u32 %v1296, 2147483648
    %v1311 = vor.u32 1.1754944e-38, %v1310
    %v1312 = vsel %vm1309, %v1311, %v1307
    %v1313 = vmul.f32 1.0, %v1312
    %v1314 = vrcp.pop %v1297
    %v1315 = vmul.f32 %v1297, %v1314
    %v1316 = vsub.f32 1.0, %v1315
    %v1317 = vmul.f32 %v1314, %v1316
    %v1318 = vadd.f32 %v1314, %v1317
    %vm1319 = vweird.f32 %v1297
    %vm1320 = vweird.f32 %v1314
    %vm1321 = vmor %vm1319, %vm1320
    %v1322 = vsel %vm1321, %v1314, %v1318
    %v1323 = vand.u32 2147483647, %v1297
    %vm1324 = vcmp.eq.f32.partialorder %v1323, 8.507059e+37
    %v1325 = vand.u32 %v1297, 2147483648
    %v1326 = vor.u32 1.1754944e-38, %v1325
    %v1327 = vsel %vm1324, %v1326, %v1322
    %v1328 = vmul.f32 1.0, %v1327
    %v1329 = vrcp.pop %v1298
    %v1330 = vmul.f32 %v1298, %v1329
    %v1331 = vsub.f32 1.0, %v1330
    %v1332 = vmul.f32 %v1329, %v1331
    %v1333 = vadd.f32 %v1329, %v1332
    %vm1334 = vweird.f32 %v1298
    %vm1335 = vweird.f32 %v1329
    %vm1336 = vmor %vm1334, %vm1335
    %v1337 = vsel %vm1336, %v1329, %v1333
    %v1338 = vand.u32 2147483647, %v1298
    %vm1339 = vcmp.eq.f32.partialorder %v1338, 8.507059e+37
    %v1340 = vand.u32 %v1298, 2147483648
    %v1341 = vor.u32 1.1754944e-38, %v1340
    %v1342 = vsel %vm1339, %v1341, %v1337
    %v1343 = vmul.f32 1.0, %v1342
    %v1344 = vtanh.pop %v1286
    %v1346 = vrot.slane %v1185, 7
    %v1348 = vmul.f32 %v1328, %v1346
    %v1349 = vmul.f32 %v1313, %v1344
    %v1350 = vadd.f32 %v1348, %v1349
    %v1351 = vtanh.pop %v1350
    %v1352 = vmul.f32 %v1343, %v1351
    %v1354 = vrot.slane %v1352, 6
    %1356 = vmatpush.msra.mxu0 %v100
    %1357 = vmatpush.msra.mxu0 %v96
    %1358 = vmatpush.msra.mxu0 %v92
    %1359 = vmatpush.msra.mxu0 %v88
    %1360 = vmatpush.msra.mxu0 %v84
    %1361 = vmatpush.msra.mxu0 %v80
    %1362 = vmatpush.msra.mxu0 %v76
    %1363 = vmatpush.msra.mxu0 %v72
    %1364 = vmatpush.msra.mxu0 %v68
    %1365 = vmatpush.msra.mxu0 %v64
    %1366 = vmatpush.msra.mxu0 %v60
    %1367 = vmatpush.msra.mxu0 %v56
    %1368 = vmatpush.msra.mxu0 %v52
    %1369 = vmatpush.msra.mxu0 %v48
    %1370 = vmatpush.msra.mxu0 %v44
    %1371 = vmatpush.msra.mxu0 %v40
    %1372 = vmatmul.f32.gmra.mxu0 %v1354
    %v1373 = vpop.f32.mrf.mxu0
    %v1374 = vadd.f32 0.0, %v1373
    %1375 = vdwg.mxu0
    %1376 = vmatpush.msra.mxu0 %v101
    %1377 = vmatpush.msra.mxu0 %v97
    %1378 = vmatpush.msra.mxu0 %v93
    %1379 = vmatpush.msra.mxu0 %v89
    %1380 = vmatpush.msra.mxu0 %v85
    %1381 = vmatpush.msra.mxu0 %v81
    %1382 = vmatpush.msra.mxu0 %v77
    %1383 = vmatpush.msra.mxu0 %v73
    %1384 = vmatpush.msra.mxu0 %v69
    %1385 = vmatpush.msra.mxu0 %v65
    %1386 = vmatpush.msra.mxu0 %v61
    %1387 = vmatpush.msra.mxu0 %v57
    %1388 = vmatpush.msra.mxu0 %v53
    %1389 = vmatpush.msra.mxu0 %v49
    %1390 = vmatpush.msra.mxu0 %v45
    %1391 = vmatpush.msra.mxu0 %v41
    %1392 = vmatmul.f32.gmra.mxu0 %v1354
    %v1393 = vpop.f32.mrf.mxu0
    %v1394 = vadd.f32 0.0, %v1393
    %1395 = vdwg.mxu0
    %1396 = vmatpush.msra.mxu0 %v102
    %1397 = vmatpush.msra.mxu0 %v98
    %1398 = vmatpush.msra.mxu0 %v94
    %1399 = vmatpush.msra.mxu0 %v90
    %1400 = vmatpush.msra.mxu0 %v86
    %1401 = vmatpush.msra.mxu0 %v82
    %1402 = vmatpush.msra.mxu0 %v78
    %1403 = vmatpush.msra.mxu0 %v74
    %1404 = vmatpush.msra.mxu0 %v70
    %1405 = vmatpush.msra.mxu0 %v66
    %1406 = vmatpush.msra.mxu0 %v62
    %1407 = vmatpush.msra.mxu0 %v58
    %1408 = vmatpush.msra.mxu0 %v54
    %1409 = vmatpush.msra.mxu0 %v50
    %1410 = vmatpush.msra.mxu0 %v46
    %1411 = vmatpush.msra.mxu0 %v42
    %1412 = vmatmul.f32.gmra.mxu0 %v1354
    %v1413 = vpop.f32.mrf.mxu0
    %v1414 = vadd.f32 0.0, %v1413
    %1415 = vdwg.mxu0
    %1416 = vmatpush.msra.mxu0 %v103
    %1417 = vmatpush.msra.mxu0 %v99
    %1418 = vmatpush.msra.mxu0 %v95
    %1419 = vmatpush.msra.mxu0 %v91
    %1420 = vmatpush.msra.mxu0 %v87
    %1421 = vmatpush.msra.mxu0 %v83
    %1422 = vmatpush.msra.mxu0 %v79
    %1423 = vmatpush.msra.mxu0 %v75
    %1424 = vmatpush.msra.mxu0 %v71
    %1425 = vmatpush.msra.mxu0 %v67
    %1426 = vmatpush.msra.mxu0 %v63
    %1427 = vmatpush.msra.mxu0 %v59
    %1428 = vmatpush.msra.mxu0 %v55
    %1429 = vmatpush.msra.mxu0 %v51
    %1430 = vmatpush.msra.mxu0 %v47
    %1431 = vmatpush.msra.mxu0 %v43
    %1432 = vmatmul.f32.gmra.mxu0 %v1354
    %v1433 = vpop.f32.mrf.mxu0
    %v1434 = vadd.f32 0.0, %v1433
    %1435 = vdwg.mxu0
    %v1440 = vrot.slane %v1374, 1
    %v1441 = vrot.slane %v1394, 1
    %v1442 = vrot.slane %v1414, 1
    %v1443 = vrot.slane %v1434, 1
    %v1448 = vadd.f32 %v157, %v1440
    %v1449 = vadd.f32 %v177, %v1441
    %v1450 = vadd.f32 %v197, %v1442
    %v1451 = vadd.f32 %v217, %v1443
    %v1452 = vxor.u32 %v1448, 2147483648
    %v1453 = vxor.u32 %v1449, 2147483648
    %v1454 = vxor.u32 %v1450, 2147483648
    %v1455 = vmul.f32 %v1452, 1.442695
    %v1456 = vpow.pop %v1455
    %v1457 = vmul.f32 %v1453, 1.442695
    %v1458 = vpow.pop %v1457
    %v1459 = vmul.f32 %v1454, 1.442695
    %v1460 = vpow.pop %v1459
    %v1461 = vadd.f32 %v1456, 1.0
    %v1462 = vadd.f32 %v1458, 1.0
    %v1463 = vadd.f32 %v1460, 1.0
    %v1464 = vrcp.pop %v1461
    %v1465 = vmul.f32 %v1461, %v1464
    %v1466 = vsub.f32 1.0, %v1465
    %v1467 = vmul.f32 %v1464, %v1466
    %v1468 = vadd.f32 %v1464, %v1467
    %vm1469 = vweird.f32 %v1461
    %vm1470 = vweird.f32 %v1464
    %vm1471 = vmor %vm1469, %vm1470
    %v1472 = vsel %vm1471, %v1464, %v1468
    %v1473 = vand.u32 2147483647, %v1461
    %vm1474 = vcmp.eq.f32.partialorder %v1473, 8.507059e+37
    %v1475 = vand.u32 %v1461, 2147483648
    %v1476 = vor.u32 1.1754944e-38, %v1475
    %v1477 = vsel %vm1474, %v1476, %v1472
    %v1478 = vmul.f32 1.0, %v1477
    %v1479 = vrcp.pop %v1462
    %v1480 = vmul.f32 %v1462, %v1479
    %v1481 = vsub.f32 1.0, %v1480
    %v1482 = vmul.f32 %v1479, %v1481
    %v1483 = vadd.f32 %v1479, %v1482
    %vm1484 = vweird.f32 %v1462
    %vm1485 = vweird.f32 %v1479
    %vm1486 = vmor %vm1484, %vm1485
    %v1487 = vsel %vm1486, %v1479, %v1483
    %v1488 = vand.u32 2147483647, %v1462
    %vm1489 = vcmp.eq.f32.partialorder %v1488, 8.507059e+37
    %v1490 = vand.u32 %v1462, 2147483648
    %v1491 = vor.u32 1.1754944e-38, %v1490
    %v1492 = vsel %vm1489, %v1491, %v1487
    %v1493 = vmul.f32 1.0, %v1492
    %v1494 = vrcp.pop %v1463
    %v1495 = vmul.f32 %v1463, %v1494
    %v1496 = vsub.f32 1.0, %v1495
    %v1497 = vmul.f32 %v1494, %v1496
    %v1498 = vadd.f32 %v1494, %v1497
    %vm1499 = vweird.f32 %v1463
    %vm1500 = vweird.f32 %v1494
    %vm1501 = vmor %vm1499, %vm1500
    %v1502 = vsel %vm1501, %v1494, %v1498
    %v1503 = vand.u32 2147483647, %v1463
    %vm1504 = vcmp.eq.f32.partialorder %v1503, 8.507059e+37
    %v1505 = vand.u32 %v1463, 2147483648
    %v1506 = vor.u32 1.1754944e-38, %v1505
    %v1507 = vsel %vm1504, %v1506, %v1502
    %v1508 = vmul.f32 1.0, %v1507
    %v1509 = vtanh.pop %v1451
    %v1511 = vrot.slane %v1350, 7
    %v1513 = vmul.f32 %v1493, %v1511
    %v1514 = vmul.f32 %v1478, %v1509
    %v1515 = vadd.f32 %v1513, %v1514
    %v1516 = vtanh.pop %v1515
    %v1517 = vmul.f32 %v1508, %v1516
    %v1518 = vld [vmem:[%s4] sm:$0xff]
    %v1519 = vld [vmem:[%s4 + $0x8] sm:$0xff]
    %v1520 = vld [vmem:[%s4 + $0x10] sm:$0xff]
    %v1521 = vld [vmem:[%s4 + $0x18] sm:$0xff]
    %v1522 = vld [vmem:[%s4 + $0x20] sm:$0xff]
    %v1523 = vld [vmem:[%s4 + $0x28] sm:$0xff]
    %v1524 = vld [vmem:[%s4 + $0x30] sm:$0xff]
    %v1525 = vld [vmem:[%s4 + $0x38] sm:$0xff]
    %v1526 = vld [vmem:[%s4 + $0x40] sm:$0xff]
    %v1527 = vld [vmem:[%s4 + $0x48] sm:$0xff]
    %v1528 = vld [vmem:[%s4 + $0x50] sm:$0xff]
    %v1529 = vld [vmem:[%s4 + $0x58] sm:$0xff]
    %v1530 = vld [vmem:[%s4 + $0x60] sm:$0xff]
    %v1531 = vld [vmem:[%s4 + $0x68] sm:$0xff]
    %v1532 = vld [vmem:[%s4 + $0x70] sm:$0xff]
    %v1533 = vld [vmem:[%s4 + $0x78] sm:$0xff]
    %v1534 = vld [vmem:[%s5] sm:$0x1]
    %v1536 = vrot.slane %v1517, 7
    %1538 = vmatpush.msra.mxu0 %v1533
    %1539 = vmatpush.msra.mxu0 %v1532
    %1540 = vmatpush.msra.mxu0 %v1531
    %1541 = vmatpush.msra.mxu0 %v1530
    %1542 = vmatpush.msra.mxu0 %v1529
    %1543 = vmatpush.msra.mxu0 %v1528
    %1544 = vmatpush.msra.mxu0 %v1527
    %1545 = vmatpush.msra.mxu0 %v1526
    %1546 = vmatpush.msra.mxu0 %v1525
    %1547 = vmatpush.msra.mxu0 %v1524
    %1548 = vmatpush.msra.mxu0 %v1523
    %1549 = vmatpush.msra.mxu0 %v1522
    %1550 = vmatpush.msra.mxu0 %v1521
    %1551 = vmatpush.msra.mxu0 %v1520
    %1552 = vmatpush.msra.mxu0 %v1519
    %1553 = vmatpush.msra.mxu0 %v1518
    %1554 = vmatmul.f32.gmra.mxu0 %v1536
    %v1555 = vpop.f32.mrf.mxu0
    %v1556 = vadd.f32 %v1534, %v1555
    %1557 = vdwg.mxu0
    %vm1558 = vcmask 16384
    %1559 = vst.msk [vmem:[#allocation5] sm:$0x1] %vm1558, %v1556
    // Predicated region
    $region30: #{tpu_custom_call.1} parent=1 // pred_check
      _
    $region31: #{tpu_custom_call.1} parent=1 // pred_check_branch
      %1561 = sbr.rel (0) target = $region33
    $region32: #{tpu_custom_call.1} parent=1 // pred_region
      %1563 = vsyncadd [#allocation4], 0
      %s1565 = sshll.u32 [#allocation5], 4
      %s1566 = int_to_ptr.vmem [resolvable:$true] %s1565
      %s1567 = sshll.u32 %s6, 4
      %s1568 = int_to_ptr.hbm [resolvable:$true] %s1567
      %1570 = dma.vmem_to_hbm [thread:$0]  %s1566, 16, %s1568, [#allocation4]
    $region33: #{tpu_custom_call.1} parent=1 // pred_fallthru
      _
    // Predicated region
    $region34: #{tpu_custom_call.1} parent=1 // pred_check
      _
    $region35: #{tpu_custom_call.1} parent=1 // pred_check_branch
      %1572 = sbr.rel (0) target = $region37
    $region36: #{tpu_custom_call.1} parent=1 // pred_region
      %1574 = dma.done [#allocation4], 16
    $region37: #{tpu_custom_call.1} parent=1 // pred_fallthru
      _
    %1575 = vsyncpa [#allocation3], 1
    %1576 = vsyncpa [#allocation4], 1

</llo_original>
